<compile_context>
chip_gen: v7x
topology: tpu7x:2x2x1
jax: 0.10.0
libtpu: 0.0.40
codegen_flags: <defaults>
</compile_context>

<pallas_src>
import functools

import jax
import jax.numpy as jnp
from jax.experimental import pallas as pl
from jax.experimental.pallas import tpu as pltpu

EPS = 1e-5
_LANE = 128


def _round_up(x, m):
    return (x + m - 1) // m * m


# ---------------------------------------------------------------------------
# Generation-aware defaults (review #7/#8/#9)
# ---------------------------------------------------------------------------
def _default_config():
    vmem_phys = 64 * 1024 * 1024          # conservative fallback = v7x per-TC VMEM
    try:
        vmem_phys = int(pltpu.get_tpu_info().vmem_capacity_bytes)
    except Exception:
        pass
    scoped = min((vmem_phys * 3) // 4, 100 * 1024 * 1024)   # ~96 MiB on 128 MiB parts, 48 MiB on v7x
    tm = 1024 if vmem_phys > (96 * 1024 * 1024) else 512
    return tm, scoped


_TM_DEFAULT, _VMEM_LIMIT = _default_config()


def _stage_vmem_bytes(tm, k_pad, c_pad, c_out):
    """Rough double-buffered working-set estimate (pass A dominates)."""
    pass_a = 2 * tm * k_pad * 2 + 2 * k_pad * c_pad * 2 + 2 * tm * c_out * 4
    pass_b = 2 * tm * c_out * (4 + 4 + 4)
    return max(pass_a, pass_b) + (2 << 20)


# ---------------------------------------------------------------------------
# Pallas kernels
# ---------------------------------------------------------------------------
def _conv_stats_kernel(p_ref, w_ref, conv_ref, sum_ref, ssq_ref, *,
                       m_total, tm, inner, c_out, masked):
    """Pass A: MXU matmul tile + per-channel sum / sum-of-squares partials.

    Grid is (groups, inner): the outer axis is "parallel" (megacore split on
    v7x, review #3), the inner axis is "arbitrary" and owns the resident
    (1, 1, c_out) partial-stat accumulators (one row per group)."""
    j = pl.program_id(1)

    acc = jnp.dot(p_ref[...], w_ref[...], preferred_element_type=jnp.float32)
    acc = acc[:, :c_out]                 # drop lane-padding columns before HBM (review #10)
    conv_ref[...] = acc

    @pl.when(j == 0)
    def _():
        sum_ref[...] = jnp.zeros_like(sum_ref)
        ssq_ref[...] = jnp.zeros_like(ssq_ref)

    if masked:
        # Only emitted when padding rows exist; only the tail tile pays for the
        # iota/compare/select (review #6).
        t = pl.program_id(0) * inner + j
        needs_mask = (t + 1) * tm > m_total

        @pl.when(needs_mask)
        def _():
            row = t * tm + jax.lax.broadcasted_iota(jnp.int32, acc.shape, 0)
            am = jnp.where(row < m_total, acc, 0.0)
            sum_ref[...] += jnp.sum(am, axis=0, keepdims=True)[None]
            ssq_ref[...] += jnp.sum(am * am, axis=0, keepdims=True)[None]

        @pl.when(jnp.logical_not(needs_mask))
        def _():
            sum_ref[...] += jnp.sum(acc, axis=0, keepdims=True)[None]
            ssq_ref[...] += jnp.sum(acc * acc, axis=0, keepdims=True)[None]
    else:
        sum_ref[...] += jnp.sum(acc, axis=0, keepdims=True)[None]
        ssq_ref[...] += jnp.sum(acc * acc, axis=0, keepdims=True)[None]


def _affine_act_kernel(conv_ref, scale_ref, shift_ref, o_ref):
    """Pass B: y = conv*scale + shift, ReLU (scale/shift pre-folded, review #5)."""
    y = conv_ref[...] * scale_ref[...] + shift_ref[...]
    o_ref[...] = jnp.maximum(y, 0.0).astype(o_ref.dtype)


def _affine_add_act_kernel(conv_ref, scale_ref, shift_ref, res_ref, o_ref):
    """Pass B with residual: y = conv*scale + shift + res, ReLU."""
    y = conv_ref[...] * scale_ref[...] + shift_ref[...] + res_ref[...]
    o_ref[...] = jnp.maximum(y, 0.0).astype(o_ref.dtype)


# ---------------------------------------------------------------------------
# pallas_call wrappers
# ---------------------------------------------------------------------------
def _conv_stats_pass(patches, w2d, m_total, tm, groups, inner, c_out, vmem_limit):
    m_pad, k_pad = patches.shape
    c_pad = w2d.shape[1]
    masked = (m_pad != m_total)

    kern = functools.partial(_conv_stats_kernel, m_total=m_total, tm=tm,
                             inner=inner, c_out=c_out, masked=masked)
    conv, s, ss = pl.pallas_call(
        kern,
        grid=(groups, inner),
        in_specs=[
            pl.BlockSpec((tm, k_pad), lambda i, j: (i * inner + j, 0)),
            pl.BlockSpec((k_pad, c_pad), lambda i, j: (0, 0)),
        ],
        out_specs=(
            pl.BlockSpec((tm, c_out), lambda i, j: (i * inner + j, 0)),
            pl.BlockSpec((1, 1, c_out), lambda i, j: (i, 0, 0)),
            pl.BlockSpec((1, 1, c_out), lambda i, j: (i, 0, 0)),
        ),
        out_shape=(
            jax.ShapeDtypeStruct((m_pad, c_out), jnp.float32),
            jax.ShapeDtypeStruct((groups, 1, c_out), jnp.float32),
            jax.ShapeDtypeStruct((groups, 1, c_out), jnp.float32),
        ),
        compiler_params=pltpu.CompilerParams(
            dimension_semantics=("parallel", "arbitrary"),
            vmem_limit_bytes=vmem_limit,
        ),
    )(patches, w2d)
    return conv, s, ss


def _affine_pass(conv, scale, shift, residual, out_dtype, tm, vmem_limit):
    m_pad, c_out = conv.shape
    grid = (m_pad // tm,)
    tile = pl.BlockSpec((tm, c_out), lambda i: (i, 0))
    small = pl.BlockSpec((1, c_out), lambda i: (0, 0))

    if residual is None:
        kern = _affine_act_kernel
        args = (conv, scale, shift)
        in_specs = [tile, small, small]
        aliases = {}
    else:
        kern = _affine_add_act_kernel
        args = (conv, scale, shift, residual)
        in_specs = [tile, small, small, tile]
        aliases = {3: 0}                 # write the output over the residual buffer

    return pl.pallas_call(
        kern,
        grid=grid,
        in_specs=in_specs,
        out_specs=tile,
        out_shape=jax.ShapeDtypeStruct((m_pad, c_out), out_dtype),
        input_output_aliases=aliases,
        compiler_params=pltpu.CompilerParams(
            dimension_semantics=("parallel",),
            vmem_limit_bytes=vmem_limit,
        ),
    )(*args)


def _bn_affine(sums, ssqs, gamma, beta, m_total):
    """Fold batch statistics into per-channel scale/shift (tiny XLA epilogue)."""
    s = jnp.sum(sums, axis=(0, 1))
    ss = jnp.sum(ssqs, axis=(0, 1))
    mean = s / float(m_total)
    var = jnp.maximum(ss / float(m_total) - mean * mean, 0.0)
    scale = gamma[0] * jax.lax.rsqrt(var + EPS)
    shift = beta[0] - mean * scale
    return scale[None, :], shift[None, :]


# ---------------------------------------------------------------------------
# JAX glue: reflection padding, im2col, one-time parameter re-layout
# ---------------------------------------------------------------------------
def _reflect_pad(x_nhwc):
    return jnp.pad(x_nhwc, ((0, 0), (1, 1), (1, 1), (0, 0)), mode="reflect")


def _im2col(xpad, H, W, k_pad):
    # (N, H+2, W+2, C) -> (N*H*W, k_pad); column order (ky, kx, cin); the zero
    # K-pad is fused into the single concatenate (no extra pad pass).
    N, _, _, C = xpad.shape
    cols = [xpad[:, dy:dy + H, dx:dx + W, :] for dy in range(3) for dx in range(3)]
    k = 9 * C
    if k_pad > k:
        cols.append(jnp.zeros((N, H, W, k_pad - k), dtype=xpad.dtype))
    patches = jnp.concatenate(cols, axis=-1)
    return patches.reshape(N * H * W, k_pad)


def _pad_rows(a, m_pad):
    return a if a.shape[0] == m_pad else jnp.pad(a, ((0, m_pad - a.shape[0]), (0, 0)))


def prepare_params(params):
    """One-time parameter re-layout (hoisted out of the hot path).

    conv weights (Cout, Cin, 3, 3) -> (k_pad, c_pad) bf16 where
      * k_pad rounds 9*Cin up only to the bf16 sublane pack (16), not 128 (review #2);
      * c_pad pads Cout up to a lane multiple (128) purely to keep the MXU matmul
        shape conventional -- only the first Cout columns are ever stored to HBM.
    gamma/beta -> (1, Cout) f32."""
    w1, g1, b1, w2, g2, b2 = params

    def prep_w(w):
        k = 9 * w.shape[1]
        k_pad = _round_up(k, 16)
        c_pad = _round_up(w.shape[0], _LANE)
        w2d = jnp.transpose(w, (2, 3, 1, 0)).reshape(k, w.shape[0]).astype(jnp.float32)
        w2d = jnp.pad(w2d, ((0, k_pad - k), (0, c_pad - w.shape[0])))
        return w2d.astype(jnp.bfloat16)

    def prep_v(v):
        return v.reshape(1, -1).astype(jnp.float32)

    return (prep_w(w1), prep_v(g1), prep_v(b1), prep_w(w2), prep_v(g2), prep_v(b2))


# ---------------------------------------------------------------------------
# Forward pass (standard branch; requires inchannel == outchannel)
# ---------------------------------------------------------------------------
@functools.partial(jax.jit, static_argnames=("tm", "vmem_limit"))
def res_block_standard(x_nchw, prepped, *, tm=_TM_DEFAULT, vmem_limit=_VMEM_LIMIT):
    """Standard resBlock forward. Input/output: NCHW float32."""
    w1, g1, b1, w2, g2, b2 = prepped
    N, C, H, W = x_nchw.shape
    k_pad, c_pad = w1.shape
    m = N * H * W

    # --- static tile sizing with VMEM working-set guard (review #7/#8/#9) ----
    tm = max(16, min(tm, _round_up(m, 8)))
    while tm > 16 and _stage_vmem_bytes(tm, k_pad, c_pad, C) > (vmem_limit * 6) // 10:
        tm //= 2
    tm = max(16, (tm // 8) * 8)
    total_tiles = -(-m // tm)
    groups = 2 if total_tiles >= 2 else 1          # megacore split of pass A (review #3)
    inner = -(-total_tiles // groups)
    m_pad = groups * inner * tm

    x_nhwc = jnp.transpose(x_nchw, (0, 2, 3, 1)).astype(jnp.float32)
    x_flat = x_nhwc.reshape(m, C)                  # residual, flattened NHWC layout

    # --- stage 1: reflect-pad -> conv3x3 -> BN -> ReLU ------------------------
    p1 = _pad_rows(_im2col(_reflect_pad(x_nhwc.astype(jnp.bfloat16)), H, W, k_pad), m_pad)
    conv1, s1, ss1 = _conv_stats_pass(p1, w1, m, tm, groups, inner, C, vmem_limit)
    scale1, shift1 = _bn_affine(s1, ss1, g1, b1, m)
    # bf16 output feeds straight into the stage-2 bf16 im2col (no slice/re-pad).
    y1 = _affine_pass(conv1, scale1, shift1, None, jnp.bfloat16, tm, vmem_limit)

    # --- stage 2: reflect-pad -> conv3x3 -> BN -> (+x) -> ReLU ----------------
    y1_nhwc = y1[:m].reshape(N, H, W, C)
    p2 = _pad_rows(_im2col(_reflect_pad(y1_nhwc), H, W, k_pad), m_pad)
    conv2, s2, ss2 = _conv_stats_pass(p2, w2, m, tm, groups, inner, C, vmem_limit)
    scale2, shift2 = _bn_affine(s2, ss2, g2, b2, m)
    res = _pad_rows(x_flat, m_pad)
    out = _affine_pass(conv2, scale2, shift2, res, jnp.float32, tm, vmem_limit)

    out = out[:m].reshape(N, H, W, C)
    return jnp.transpose(out, (0, 3, 1, 2))


# ---------------------------------------------------------------------------
# Pure-JAX reference (same bf16 quantization of MXU operands and of the
# stage-1 activation handoff; conv accumulation and BN math stay in f32)
# ---------------------------------------------------------------------------
def _ref_forward(x, params):
    w1, g1, b1, w2, g2, b2 = params
    q = lambda t: t.astype(jnp.bfloat16).astype(jnp.float32)

    def rpad(t):
        return jnp.pad(t, ((0, 0), (0, 0), (1, 1), (1, 1)), mode="reflect")

    def conv(t, w):
        return jax.lax.conv_general_dilated(
            t, w, (1, 1), "VALID", dimension_numbers=("NCHW", "OIHW", "NCHW"))

    def bn(t, g, b):
        mean = jnp.mean(t, axis=(0, 2, 3), keepdims=True)
        var = jnp.mean((t - mean) ** 2, axis=(0, 2, 3), keepdims=True)
        return ((t - mean) * jax.lax.rsqrt(var + EPS)
                * g.reshape(1, -1, 1, 1) + b.reshape(1, -1, 1, 1))

    h = jax.nn.relu(bn(conv(rpad(q(x)), q(w1)), g1, b1))
    h = bn(conv(rpad(q(h)), q(w2)), g2, b2)
    return jax.nn.relu(h + x)


# ---------------------------------------------------------------------------
if __name__ == "__main__":
    N, C, H, W = 2, 4, 16, 16   # inchannel == outchannel == 4 (standard branch)
    key = jax.random.PRNGKey(0)
    kx, kw1, kg1, kb1, kw2, kg2, kb2 = jax.random.split(key, 7)

    x = jax.random.normal(kx, (N, C, H, W), dtype=jnp.float32)
    w1 = jax.random.normal(kw1, (C, C, 3, 3), dtype=jnp.float32) * 0.1
    g1 = 1.0 + 0.1 * jax.random.normal(kg1, (C,), dtype=jnp.float32)
    b1 = 0.1 * jax.random.normal(kb1, (C,), dtype=jnp.float32)
    w2 = jax.random.normal(kw2, (C, C, 3, 3), dtype=jnp.float32) * 0.1
    g2 = 1.0 + 0.1 * jax.random.normal(kg2, (C,), dtype=jnp.float32)
    b2 = 0.1 * jax.random.normal(kb2, (C,), dtype=jnp.float32)
    params = (w1, g1, b1, w2, g2, b2)

    prepped = prepare_params(params)   # one-time parameter re-layout
    ref = jax.block_until_ready(_ref_forward(x, params))

    # Default (generation-aware) tiling: single row tile here, groups=1.
    out = jax.block_until_ready(res_block_standard(x, prepped))
    assert out.shape == (N, C, H, W)
    assert bool(jnp.all(jnp.isfinite(out)))
    # Tolerance covers the bf16 quantization of the stage-1 activation handoff
    # (one bf16 ulp on a near-tie value is ~4e-3 at the output); typical max
    # error is ~1e-5.
    err = float(jnp.max(jnp.abs(out - ref)))
    assert err < 5e-3, err

    # Small-tile config: exercises the megacore partial-stats path (grid (2,3))
    # and the padded-row masking path (m=512 -> m_pad=576).
    out2 = jax.block_until_ready(res_block_standard(x, prepped, tm=96))
    assert out2.shape == (N, C, H, W)
    assert bool(jnp.all(jnp.isfinite(out2)))
    err2 = float(jnp.max(jnp.abs(out2 - ref)))
    assert err2 < 5e-3, err2

    print("KERNEL_OK")
</pallas_src>

<mosaic_0001>
module attributes {stable_mosaic.version = 11 : i64} {
  func.func @_conv_stats_kernel(%arg0: i32, %arg1: i32, %arg2: memref<512x48xbf16, #tpu.memory_space<vmem>>, %arg3: memref<48x128xbf16, #tpu.memory_space<vmem>>, %arg4: memref<512x4xf32, #tpu.memory_space<vmem>>, %arg5: memref<1x1x4xf32, #tpu.memory_space<vmem>>, %arg6: memref<1x1x4xf32, #tpu.memory_space<vmem>>) attributes {dimension_semantics = [#tpu.dimension_semantics<parallel>, #tpu.dimension_semantics<arbitrary>], iteration_bounds = array<i64: 1, 1>, scalar_prefetch = 0 : i64, scratch_operands = 0 : i64, tpu.core_type = #tpu.core_type<tc>, window_params = [{transform_indices = @transform_0, window_bounds = array<i64: 512, 48>}, {pipeline_mode = #tpu.pipeline_mode<synchronous>, transform_indices = @transform_1, window_bounds = array<i64: 48, 128>}, {transform_indices = @transform_2, window_bounds = array<i64: 512, 4>}, {transform_indices = @transform_3, window_bounds = array<i64: 1, 1, 4>}, {transform_indices = @transform_4, window_bounds = array<i64: 1, 1, 4>}]} {
    %c0 = arith.constant 0 : index
    %c0_0 = arith.constant 0 : index
    %0 = vector.load %arg2[%c0, %c0_0] : memref<512x48xbf16, #tpu.memory_space<vmem>>, vector<512x48xbf16>
    %c0_1 = arith.constant 0 : index
    %c0_2 = arith.constant 0 : index
    %1 = vector.load %arg3[%c0_1, %c0_2] : memref<48x128xbf16, #tpu.memory_space<vmem>>, vector<48x128xbf16>
    %cst = arith.constant dense<0.000000e+00> : vector<512x128xf32>
    %2 = tpu.matmul %0, %1, %cst {dimension_numbers = #tpu.dot_dimension_numbers<[1], [0], [0], [1], [0, 0, 1, 1], [], []>} : vector<512x48xbf16>, vector<48x128xbf16>, vector<512x128xf32> -> vector<512x128xf32>
    %3 = vector.extract_strided_slice %2 {offsets = [0, 0], sizes = [512, 4], strides = [1, 1]} : vector<512x128xf32> to vector<512x4xf32>
    %c0_3 = arith.constant 0 : index
    %c0_4 = arith.constant 0 : index
    %4 = vector.load %arg4[%c0_3, %c0_4] : memref<512x4xf32, #tpu.memory_space<vmem>>, vector<512x4xf32>
    tpu.vector_store %arg4[%c0_3, %c0_4], %3 {strides = array<i32>} : memref<512x4xf32, #tpu.memory_space<vmem>>, vector<512x4xf32>,
    %c0_i32 = arith.constant 0 : i32
    %5 = arith.cmpi eq, %arg1, %c0_i32 : i32
    %6 = arith.extui %5 : i1 to i32
    %c0_i32_5 = arith.constant 0 : i32
    %7 = arith.cmpi ne, %6, %c0_i32_5 : i32
    scf.if %7 {
      %cst_20 = arith.constant 0.000000e+00 : f32
      %21 = vector.broadcast %cst_20 : f32 to vector<1x1x4xf32>
      %c0_21 = arith.constant 0 : index
      %c0_22 = arith.constant 0 : index
      %c0_23 = arith.constant 0 : index
      %22 = vector.load %arg5[%c0_21, %c0_22, %c0_23] : memref<1x1x4xf32, #tpu.memory_space<vmem>>, vector<1x1x4xf32>
      tpu.vector_store %arg5[%c0_21, %c0_22, %c0_23], %21 {strides = array<i32>} : memref<1x1x4xf32, #tpu.memory_space<vmem>>, vector<1x1x4xf32>,
      %cst_24 = arith.constant 0.000000e+00 : f32
      %23 = vector.broadcast %cst_24 : f32 to vector<1x1x4xf32>
      %c0_25 = arith.constant 0 : index
      %c0_26 = arith.constant 0 : index
      %c0_27 = arith.constant 0 : index
      %24 = vector.load %arg6[%c0_25, %c0_26, %c0_27] : memref<1x1x4xf32, #tpu.memory_space<vmem>>, vector<1x1x4xf32>
      tpu.vector_store %arg6[%c0_25, %c0_26, %c0_27], %23 {strides = array<i32>} : memref<1x1x4xf32, #tpu.memory_space<vmem>>, vector<1x1x4xf32>,
    } else {
    }
    %c0_6 = arith.constant 0 : index
    %c0_7 = arith.constant 0 : index
    %c0_8 = arith.constant 0 : index
    %8 = vector.load %arg5[%c0_6, %c0_7, %c0_8] : memref<1x1x4xf32, #tpu.memory_space<vmem>>, vector<1x1x4xf32>
    %cst_9 = arith.constant dense<0.000000e+00> : vector<4xf32>
    %9 = vector.multi_reduction <add>, %3, %cst_9 [0] : vector<512x4xf32> to vector<4xf32>
    %10 = vector.shape_cast %9 : vector<4xf32> to vector<1x4xf32>
    %11 = vector.shape_cast %10 : vector<1x4xf32> to vector<1x1x4xf32>
    %12 = arith.addf %8, %11 : vector<1x1x4xf32>
    %c0_10 = arith.constant 0 : index
    %c0_11 = arith.constant 0 : index
    %c0_12 = arith.constant 0 : index
    %13 = vector.load %arg5[%c0_10, %c0_11, %c0_12] : memref<1x1x4xf32, #tpu.memory_space<vmem>>, vector<1x1x4xf32>
    tpu.vector_store %arg5[%c0_10, %c0_11, %c0_12], %12 {strides = array<i32>} : memref<1x1x4xf32, #tpu.memory_space<vmem>>, vector<1x1x4xf32>,
    %c0_13 = arith.constant 0 : index
    %c0_14 = arith.constant 0 : index
    %c0_15 = arith.constant 0 : index
    %14 = vector.load %arg6[%c0_13, %c0_14, %c0_15] : memref<1x1x4xf32, #tpu.memory_space<vmem>>, vector<1x1x4xf32>
    %15 = arith.mulf %3, %3 : vector<512x4xf32>
    %cst_16 = arith.constant dense<0.000000e+00> : vector<4xf32>
    %16 = vector.multi_reduction <add>, %15, %cst_16 [0] : vector<512x4xf32> to vector<4xf32>
    %17 = vector.shape_cast %16 : vector<4xf32> to vector<1x4xf32>
    %18 = vector.shape_cast %17 : vector<1x4xf32> to vector<1x1x4xf32>
    %19 = arith.addf %14, %18 : vector<1x1x4xf32>
    %c0_17 = arith.constant 0 : index
    %c0_18 = arith.constant 0 : index
    %c0_19 = arith.constant 0 : index
    %20 = vector.load %arg6[%c0_17, %c0_18, %c0_19] : memref<1x1x4xf32, #tpu.memory_space<vmem>>, vector<1x1x4xf32>
    tpu.vector_store %arg6[%c0_17, %c0_18, %c0_19], %19 {strides = array<i32>} : memref<1x1x4xf32, #tpu.memory_space<vmem>>, vector<1x1x4xf32>,
    return
  }
  func.func @transform_0(%arg0: i32, %arg1: i32) -> (i32, i32) {
    %c1_i32 = arith.constant 1 : i32
    %0 = arith.muli %arg0, %c1_i32 : i32
    %1 = arith.addi %0, %arg1 : i32
    %c0_i32 = arith.constant 0 : i32
    %c0_i32_0 = arith.constant 0 : i32
    return %1, %c0_i32 : i32, i32
  }
  func.func @transform_1(%arg0: i32, %arg1: i32) -> (i32, i32) {
    %c0_i32 = arith.constant 0 : i32
    %c0_i32_0 = arith.constant 0 : i32
    %c0_i32_1 = arith.constant 0 : i32
    return %c0_i32, %c0_i32_0 : i32, i32
  }
  func.func @transform_2(%arg0: i32, %arg1: i32) -> (i32, i32) {
    %c1_i32 = arith.constant 1 : i32
    %0 = arith.muli %arg0, %c1_i32 : i32
    %1 = arith.addi %0, %arg1 : i32
    %c0_i32 = arith.constant 0 : i32
    %c0_i32_0 = arith.constant 0 : i32
    return %1, %c0_i32 : i32, i32
  }
  func.func @transform_3(%arg0: i32, %arg1: i32) -> (i32, i32, i32) {
    %c0_i32 = arith.constant 0 : i32
    %c0_i32_0 = arith.constant 0 : i32
    %c0_i32_1 = arith.constant 0 : i32
    return %arg0, %c0_i32, %c0_i32_0 : i32, i32, i32
  }
  func.func @transform_4(%arg0: i32, %arg1: i32) -> (i32, i32, i32) {
    %c0_i32 = arith.constant 0 : i32
    %c0_i32_0 = arith.constant 0 : i32
    %c0_i32_1 = arith.constant 0 : i32
    return %arg0, %c0_i32, %c0_i32_0 : i32, i32, i32
  }
}

module attributes {stable_mosaic.version = 11 : i64} {
  func.func @_affine_act_kernel(%arg0: i32, %arg1: memref<512x4xf32, #tpu.memory_space<vmem>>, %arg2: memref<1x4xf32, #tpu.memory_space<vmem>>, %arg3: memref<1x4xf32, #tpu.memory_space<vmem>>, %arg4: memref<512x4xbf16, #tpu.memory_space<vmem>>) attributes {dimension_semantics = [#tpu.dimension_semantics<parallel>], iteration_bounds = array<i64: 1>, scalar_prefetch = 0 : i64, scratch_operands = 0 : i64, tpu.core_type = #tpu.core_type<tc>, window_params = [{transform_indices = @transform_0, window_bounds = array<i64: 512, 4>}, {pipeline_mode = #tpu.pipeline_mode<synchronous>, transform_indices = @transform_1, window_bounds = array<i64: 1, 4>}, {pipeline_mode = #tpu.pipeline_mode<synchronous>, transform_indices = @transform_2, window_bounds = array<i64: 1, 4>}, {transform_indices = @transform_3, window_bounds = array<i64: 512, 4>}]} {
    %c0 = arith.constant 0 : index
    %c0_0 = arith.constant 0 : index
    %0 = vector.load %arg1[%c0, %c0_0] : memref<512x4xf32, #tpu.memory_space<vmem>>, vector<512x4xf32>
    %c0_1 = arith.constant 0 : index
    %c0_2 = arith.constant 0 : index
    %1 = vector.load %arg2[%c0_1, %c0_2] : memref<1x4xf32, #tpu.memory_space<vmem>>, vector<1x4xf32>
    %2 = vector.broadcast %1 : vector<1x4xf32> to vector<512x4xf32>
    %3 = arith.mulf %0, %2 : vector<512x4xf32>
    %c0_3 = arith.constant 0 : index
    %c0_4 = arith.constant 0 : index
    %4 = vector.load %arg3[%c0_3, %c0_4] : memref<1x4xf32, #tpu.memory_space<vmem>>, vector<1x4xf32>
    %5 = vector.broadcast %4 : vector<1x4xf32> to vector<512x4xf32>
    %6 = arith.addf %3, %5 : vector<512x4xf32>
    %cst = arith.constant 0.000000e+00 : f32
    %7 = vector.broadcast %cst : f32 to vector<512x4xf32>
    %8 = arith.maximumf %6, %7 : vector<512x4xf32>
    %9 = arith.truncf %8 : vector<512x4xf32> to vector<512x4xbf16>
    %c0_5 = arith.constant 0 : index
    %c0_6 = arith.constant 0 : index
    %10 = vector.load %arg4[%c0_5, %c0_6] : memref<512x4xbf16, #tpu.memory_space<vmem>>, vector<512x4xbf16>
    tpu.vector_store %arg4[%c0_5, %c0_6], %9 {strides = array<i32>} : memref<512x4xbf16, #tpu.memory_space<vmem>>, vector<512x4xbf16>,
    return
  }
  func.func @transform_0(%arg0: i32) -> (i32, i32) {
    %c0_i32 = arith.constant 0 : i32
    %c0_i32_0 = arith.constant 0 : i32
    return %arg0, %c0_i32 : i32, i32
  }
  func.func @transform_1(%arg0: i32) -> (i32, i32) {
    %c0_i32 = arith.constant 0 : i32
    %c0_i32_0 = arith.constant 0 : i32
    %c0_i32_1 = arith.constant 0 : i32
    return %c0_i32, %c0_i32_0 : i32, i32
  }
  func.func @transform_2(%arg0: i32) -> (i32, i32) {
    %c0_i32 = arith.constant 0 : i32
    %c0_i32_0 = arith.constant 0 : i32
    %c0_i32_1 = arith.constant 0 : i32
    return %c0_i32, %c0_i32_0 : i32, i32
  }
  func.func @transform_3(%arg0: i32) -> (i32, i32) {
    %c0_i32 = arith.constant 0 : i32
    %c0_i32_0 = arith.constant 0 : i32
    return %arg0, %c0_i32 : i32, i32
  }
}

module attributes {stable_mosaic.version = 11 : i64} {
  func.func @_affine_add_act_kernel(%arg0: i32, %arg1: memref<512x4xf32, #tpu.memory_space<vmem>>, %arg2: memref<1x4xf32, #tpu.memory_space<vmem>>, %arg3: memref<1x4xf32, #tpu.memory_space<vmem>>, %arg4: memref<512x4xf32, #tpu.memory_space<vmem>>, %arg5: memref<512x4xf32, #tpu.memory_space<vmem>>) attributes {dimension_semantics = [#tpu.dimension_semantics<parallel>], iteration_bounds = array<i64: 1>, scalar_prefetch = 0 : i64, scratch_operands = 0 : i64, tpu.core_type = #tpu.core_type<tc>, window_params = [{transform_indices = @transform_0, window_bounds = array<i64: 512, 4>}, {pipeline_mode = #tpu.pipeline_mode<synchronous>, transform_indices = @transform_1, window_bounds = array<i64: 1, 4>}, {pipeline_mode = #tpu.pipeline_mode<synchronous>, transform_indices = @transform_2, window_bounds = array<i64: 1, 4>}, {transform_indices = @transform_3, window_bounds = array<i64: 512, 4>}, {transform_indices = @transform_4, window_bounds = array<i64: 512, 4>}]} {
    %c0 = arith.constant 0 : index
    %c0_0 = arith.constant 0 : index
    %0 = vector.load %arg1[%c0, %c0_0] : memref<512x4xf32, #tpu.memory_space<vmem>>, vector<512x4xf32>
    %c0_1 = arith.constant 0 : index
    %c0_2 = arith.constant 0 : index
    %1 = vector.load %arg2[%c0_1, %c0_2] : memref<1x4xf32, #tpu.memory_space<vmem>>, vector<1x4xf32>
    %2 = vector.broadcast %1 : vector<1x4xf32> to vector<512x4xf32>
    %3 = arith.mulf %0, %2 : vector<512x4xf32>
    %c0_3 = arith.constant 0 : index
    %c0_4 = arith.constant 0 : index
    %4 = vector.load %arg3[%c0_3, %c0_4] : memref<1x4xf32, #tpu.memory_space<vmem>>, vector<1x4xf32>
    %5 = vector.broadcast %4 : vector<1x4xf32> to vector<512x4xf32>
    %6 = arith.addf %3, %5 : vector<512x4xf32>
    %c0_5 = arith.constant 0 : index
    %c0_6 = arith.constant 0 : index
    %7 = vector.load %arg4[%c0_5, %c0_6] : memref<512x4xf32, #tpu.memory_space<vmem>>, vector<512x4xf32>
    %8 = arith.addf %6, %7 : vector<512x4xf32>
    %cst = arith.constant 0.000000e+00 : f32
    %9 = vector.broadcast %cst : f32 to vector<512x4xf32>
    %10 = arith.maximumf %8, %9 : vector<512x4xf32>
    %c0_7 = arith.constant 0 : index
    %c0_8 = arith.constant 0 : index
    %11 = vector.load %arg5[%c0_7, %c0_8] : memref<512x4xf32, #tpu.memory_space<vmem>>, vector<512x4xf32>
    tpu.vector_store %arg5[%c0_7, %c0_8], %10 {strides = array<i32>} : memref<512x4xf32, #tpu.memory_space<vmem>>, vector<512x4xf32>,
    return
  }
  func.func @transform_0(%arg0: i32) -> (i32, i32) {
    %c0_i32 = arith.constant 0 : i32
    %c0_i32_0 = arith.constant 0 : i32
    return %arg0, %c0_i32 : i32, i32
  }
  func.func @transform_1(%arg0: i32) -> (i32, i32) {
    %c0_i32 = arith.constant 0 : i32
    %c0_i32_0 = arith.constant 0 : i32
    %c0_i32_1 = arith.constant 0 : i32
    return %c0_i32, %c0_i32_0 : i32, i32
  }
  func.func @transform_2(%arg0: i32) -> (i32, i32) {
    %c0_i32 = arith.constant 0 : i32
    %c0_i32_0 = arith.constant 0 : i32
    %c0_i32_1 = arith.constant 0 : i32
    return %c0_i32, %c0_i32_0 : i32, i32
  }
  func.func @transform_3(%arg0: i32) -> (i32, i32) {
    %c0_i32 = arith.constant 0 : i32
    %c0_i32_0 = arith.constant 0 : i32
    return %arg0, %c0_i32 : i32, i32
  }
  func.func @transform_4(%arg0: i32) -> (i32, i32) {
    %c0_i32 = arith.constant 0 : i32
    %c0_i32_0 = arith.constant 0 : i32
    return %arg0, %c0_i32 : i32, i32
  }
}

</mosaic_0001>

<llo_original>
// kernel: res_block_standard.5
$region0: #{res_block_standard.5}
  #allocation0 [shape = 'u32[]', space=smem, size = 0x4, offset = 0x4, fixed_abs, tag = 'smem constant byte address 0x4 - core index']
  #allocation1 [shape = 'u32[144,128]{1,0:T(1,128)}', space=vmem, size = 0x12000, scoped, tag = 'internal scratch']
  %s0 = inlined_call_operand.vmem [shape: f32[512,4], index: 0, kind: input, shape index: {}]
  %s1 = inlined_call_operand.vmem [shape: f32[1,4], index: 1, kind: input, shape index: {}]
  %s2 = inlined_call_operand.vmem [shape: f32[1,4], index: 2, kind: input, shape index: {}]
  %s3 = inlined_call_operand.vmem [shape: bf16[512,4], index: 3, kind: output, shape index: {}]
  %s4 = sld [smem:[#allocation0]]
  $region22: #{res_block_standard.5} parent=0
    _
  %s6 = ssub.s32 1, %s4
  %s7 = scalar_select 0, %s6, %s4
  // Predicated region
  $region2: #{res_block_standard.5} parent=0 // pred_check
    _
  $region3: #{res_block_standard.5} parent=0 // pred_check_branch
    %9 = sbr.rel (0) target = $region5
  $region4: #{res_block_standard.5} parent=0 // pred_region
    _
  $region5: #{res_block_standard.5} parent=0 // pred_fallthru
    _
  // Predicated region
  $region6: #{res_block_standard.5} parent=0 // pred_check
    _
  $region7: #{res_block_standard.5} parent=0 // pred_check_branch
    %11 = sbr.rel (0) target = $region9
  $region8: #{res_block_standard.5} parent=0 // pred_region
    _
  $region9: #{res_block_standard.5} parent=0 // pred_fallthru
    _
  // Predicated region
  $region10: #{res_block_standard.5} parent=0 // pred_check
    _
  $region11: #{res_block_standard.5} parent=0 // pred_check_branch
    %13 = sbr.rel (0) target = $region13
  $region12: #{res_block_standard.5} parent=0 // pred_region
    _
  $region13: #{res_block_standard.5} parent=0 // pred_fallthru
    _
  %v14 = vld [vmem:[%s0] sm:$0xff]
  %v15 = vld [vmem:[%s0 + $0x8] sm:$0xff]
  %v16 = vld [vmem:[%s0 + $0x10] sm:$0xff]
  %v17 = vld [vmem:[%s0 + $0x18] sm:$0xff]
  %v18 = vld [vmem:[%s0 + $0x20] sm:$0xff]
  %v19 = vld [vmem:[%s0 + $0x28] sm:$0xff]
  %v20 = vld [vmem:[%s0 + $0x30] sm:$0xff]
  %v21 = vld [vmem:[%s0 + $0x38] sm:$0xff]
  %v22 = vld [vmem:[%s0 + $0x40] sm:$0xff]
  %v23 = vld [vmem:[%s0 + $0x48] sm:$0xff]
  %v24 = vld [vmem:[%s0 + $0x50] sm:$0xff]
  %v25 = vld [vmem:[%s0 + $0x58] sm:$0xff]
  %v26 = vld [vmem:[%s0 + $0x60] sm:$0xff]
  %v27 = vld [vmem:[%s0 + $0x68] sm:$0xff]
  %v28 = vld [vmem:[%s0 + $0x70] sm:$0xff]
  %v29 = vld [vmem:[%s0 + $0x78] sm:$0xff]
  %v30 = vld [vmem:[%s0 + $0x80] sm:$0xff]
  %v31 = vld [vmem:[%s0 + $0x88] sm:$0xff]
  %v32 = vld [vmem:[%s0 + $0x90] sm:$0xff]
  %v33 = vld [vmem:[%s0 + $0x98] sm:$0xff]
  %v34 = vld [vmem:[%s0 + $0xa0] sm:$0xff]
  %v35 = vld [vmem:[%s0 + $0xa8] sm:$0xff]
  %v36 = vld [vmem:[%s0 + $0xb0] sm:$0xff]
  %v37 = vld [vmem:[%s0 + $0xb8] sm:$0xff]
  %v38 = vld [vmem:[%s0 + $0xc0] sm:$0xff]
  %v39 = vld [vmem:[%s0 + $0xc8] sm:$0xff]
  %v40 = vld [vmem:[%s0 + $0xd0] sm:$0xff]
  %v41 = vld [vmem:[%s0 + $0xd8] sm:$0xff]
  %v42 = vld [vmem:[%s0 + $0xe0] sm:$0xff]
  %v43 = vld [vmem:[%s0 + $0xe8] sm:$0xff]
  %v44 = vld [vmem:[%s0 + $0xf0] sm:$0xff]
  %v45 = vld [vmem:[%s0 + $0xf8] sm:$0xff]
  %v46 = vld [vmem:[%s0 + $0x100] sm:$0xff]
  %v47 = vld [vmem:[%s0 + $0x108] sm:$0xff]
  %v48 = vld [vmem:[%s0 + $0x110] sm:$0xff]
  %v49 = vld [vmem:[%s0 + $0x118] sm:$0xff]
  %v50 = vld [vmem:[%s0 + $0x120] sm:$0xff]
  %v51 = vld [vmem:[%s0 + $0x128] sm:$0xff]
  %v52 = vld [vmem:[%s0 + $0x130] sm:$0xff]
  %v53 = vld [vmem:[%s0 + $0x138] sm:$0xff]
  %v54 = vld [vmem:[%s0 + $0x140] sm:$0xff]
  %v55 = vld [vmem:[%s0 + $0x148] sm:$0xff]
  %v56 = vld [vmem:[%s0 + $0x150] sm:$0xff]
  %v57 = vld [vmem:[%s0 + $0x158] sm:$0xff]
  %v58 = vld [vmem:[%s0 + $0x160] sm:$0xff]
  %v59 = vld [vmem:[%s0 + $0x168] sm:$0xff]
  %v60 = vld [vmem:[%s0 + $0x170] sm:$0xff]
  %v61 = vld [vmem:[%s0 + $0x178] sm:$0xff]
  %v62 = vld [vmem:[%s0 + $0x180] sm:$0xff]
  %v63 = vld [vmem:[%s0 + $0x188] sm:$0xff]
  %v64 = vld [vmem:[%s0 + $0x190] sm:$0xff]
  %v65 = vld [vmem:[%s0 + $0x198] sm:$0xff]
  %v66 = vld [vmem:[%s0 + $0x1a0] sm:$0xff]
  %v67 = vld [vmem:[%s0 + $0x1a8] sm:$0xff]
  %v68 = vld [vmem:[%s0 + $0x1b0] sm:$0xff]
  %v69 = vld [vmem:[%s0 + $0x1b8] sm:$0xff]
  %v70 = vld [vmem:[%s0 + $0x1c0] sm:$0xff]
  %v71 = vld [vmem:[%s0 + $0x1c8] sm:$0xff]
  %v72 = vld [vmem:[%s0 + $0x1d0] sm:$0xff]
  %v73 = vld [vmem:[%s0 + $0x1d8] sm:$0xff]
  %v74 = vld [vmem:[%s0 + $0x1e0] sm:$0xff]
  %v75 = vld [vmem:[%s0 + $0x1e8] sm:$0xff]
  %v76 = vld [vmem:[%s0 + $0x1f0] sm:$0xff]
  %v77 = vld [vmem:[%s0 + $0x1f8] sm:$0xff]
  %v78 = vld [vmem:[%s1] sm:$0x1]
  %v80 = vlaneseq
  %v81 = vshrl.u32 %v80, 7
  %v82 = vsub.s32 0, %v81
  %v83 = vrot.slane %v78, %v82
  %v85 = vmul.f32 %v14, %v83
  %v86 = vmul.f32 %v15, %v83
  %v87 = vmul.f32 %v16, %v83
  %v88 = vmul.f32 %v17, %v83
  %v89 = vmul.f32 %v18, %v83
  %v90 = vmul.f32 %v19, %v83
  %v91 = vmul.f32 %v20, %v83
  %v92 = vmul.f32 %v21, %v83
  %v93 = vmul.f32 %v22, %v83
  %v94 = vmul.f32 %v23, %v83
  %v95 = vmul.f32 %v24, %v83
  %v96 = vmul.f32 %v25, %v83
  %v97 = vmul.f32 %v26, %v83
  %v98 = vmul.f32 %v27, %v83
  %v99 = vmul.f32 %v28, %v83
  %v100 = vmul.f32 %v29, %v83
  %v101 = vmul.f32 %v30, %v83
  %v102 = vmul.f32 %v31, %v83
  %v103 = vmul.f32 %v32, %v83
  %v104 = vmul.f32 %v33, %v83
  %v105 = vmul.f32 %v34, %v83
  %v106 = vmul.f32 %v35, %v83
  %v107 = vmul.f32 %v36, %v83
  %v108 = vmul.f32 %v37, %v83
  %v109 = vmul.f32 %v38, %v83
  %v110 = vmul.f32 %v39, %v83
  %v111 = vmul.f32 %v40, %v83
  %v112 = vmul.f32 %v41, %v83
  %v113 = vmul.f32 %v42, %v83
  %v114 = vmul.f32 %v43, %v83
  %v115 = vmul.f32 %v44, %v83
  %v116 = vmul.f32 %v45, %v83
  %v117 = vmul.f32 %v46, %v83
  %v118 = vmul.f32 %v47, %v83
  %v119 = vmul.f32 %v48, %v83
  %v120 = vmul.f32 %v49, %v83
  %v121 = vmul.f32 %v50, %v83
  %v122 = vmul.f32 %v51, %v83
  %v123 = vmul.f32 %v52, %v83
  %v124 = vmul.f32 %v53, %v83
  %v125 = vmul.f32 %v54, %v83
  %v126 = vmul.f32 %v55, %v83
  %v127 = vmul.f32 %v56, %v83
  %v128 = vmul.f32 %v57, %v83
  %v129 = vmul.f32 %v58, %v83
  %v130 = vmul.f32 %v59, %v83
  %v131 = vmul.f32 %v60, %v83
  %v132 = vmul.f32 %v61, %v83
  %v133 = vmul.f32 %v62, %v83
  %v134 = vmul.f32 %v63, %v83
  %v135 = vmul.f32 %v64, %v83
  %v136 = vmul.f32 %v65, %v83
  %v137 = vmul.f32 %v66, %v83
  %v138 = vmul.f32 %v67, %v83
  %v139 = vmul.f32 %v68, %v83
  %v140 = vmul.f32 %v69, %v83
  %v141 = vmul.f32 %v70, %v83
  %v142 = vmul.f32 %v71, %v83
  %v143 = vmul.f32 %v72, %v83
  %v144 = vmul.f32 %v73, %v83
  %v145 = vmul.f32 %v74, %v83
  %v146 = vmul.f32 %v75, %v83
  %v147 = vmul.f32 %v76, %v83
  %v148 = vmul.f32 %v77, %v83
  %v149 = vld [vmem:[%s2] sm:$0x1]
  %v151 = vlaneseq
  %v152 = vshrl.u32 %v151, 7
  %v153 = vsub.s32 0, %v152
  %v154 = vrot.slane %v149, %v153
  %v156 = vadd.f32 %v85, %v154
  %v157 = vadd.f32 %v86, %v154
  %v158 = vadd.f32 %v87, %v154
  %v159 = vadd.f32 %v88, %v154
  %v160 = vadd.f32 %v89, %v154
  %v161 = vadd.f32 %v90, %v154
  %v162 = vadd.f32 %v91, %v154
  %v163 = vadd.f32 %v92, %v154
  %v164 = vadd.f32 %v93, %v154
  %v165 = vadd.f32 %v94, %v154
  %v166 = vadd.f32 %v95, %v154
  %v167 = vadd.f32 %v96, %v154
  %v168 = vadd.f32 %v97, %v154
  %v169 = vadd.f32 %v98, %v154
  %v170 = vadd.f32 %v99, %v154
  %v171 = vadd.f32 %v100, %v154
  %v172 = vadd.f32 %v101, %v154
  %v173 = vadd.f32 %v102, %v154
  %v174 = vadd.f32 %v103, %v154
  %v175 = vadd.f32 %v104, %v154
  %v176 = vadd.f32 %v105, %v154
  %v177 = vadd.f32 %v106, %v154
  %v178 = vadd.f32 %v107, %v154
  %v179 = vadd.f32 %v108, %v154
  %v180 = vadd.f32 %v109, %v154
  %v181 = vadd.f32 %v110, %v154
  %v182 = vadd.f32 %v111, %v154
  %v183 = vadd.f32 %v112, %v154
  %v184 = vadd.f32 %v113, %v154
  %v185 = vadd.f32 %v114, %v154
  %v186 = vadd.f32 %v115, %v154
  %v187 = vadd.f32 %v116, %v154
  %v188 = vadd.f32 %v117, %v154
  %v189 = vadd.f32 %v118, %v154
  %v190 = vadd.f32 %v119, %v154
  %v191 = vadd.f32 %v120, %v154
  %v192 = vadd.f32 %v121, %v154
  %v193 = vadd.f32 %v122, %v154
  %v194 = vadd.f32 %v123, %v154
  %v195 = vadd.f32 %v124, %v154
  %v196 = vadd.f32 %v125, %v154
  %v197 = vadd.f32 %v126, %v154
  %v198 = vadd.f32 %v127, %v154
  %v199 = vadd.f32 %v128, %v154
  %v200 = vadd.f32 %v129, %v154
  %v201 = vadd.f32 %v130, %v154
  %v202 = vadd.f32 %v131, %v154
  %v203 = vadd.f32 %v132, %v154
  %v204 = vadd.f32 %v133, %v154
  %v205 = vadd.f32 %v134, %v154
  %v206 = vadd.f32 %v135, %v154
  %v207 = vadd.f32 %v136, %v154
  %v208 = vadd.f32 %v137, %v154
  %v209 = vadd.f32 %v138, %v154
  %v210 = vadd.f32 %v139, %v154
  %v211 = vadd.f32 %v140, %v154
  %v212 = vadd.f32 %v141, %v154
  %v213 = vadd.f32 %v142, %v154
  %v214 = vadd.f32 %v143, %v154
  %v215 = vadd.f32 %v144, %v154
  %v216 = vadd.f32 %v145, %v154
  %v217 = vadd.f32 %v146, %v154
  %v218 = vadd.f32 %v147, %v154
  %v219 = vadd.f32 %v148, %v154
  %v220 = vmax.f32 %v156, 0.0
  %v221 = vmax.f32 %v157, 0.0
  %v222 = vmax.f32 %v158, 0.0
  %v223 = vmax.f32 %v159, 0.0
  %v224 = vmax.f32 %v160, 0.0
  %v225 = vmax.f32 %v161, 0.0
  %v226 = vmax.f32 %v162, 0.0
  %v227 = vmax.f32 %v163, 0.0
  %v228 = vmax.f32 %v164, 0.0
  %v229 = vmax.f32 %v165, 0.0
  %v230 = vmax.f32 %v166, 0.0
  %v231 = vmax.f32 %v167, 0.0
  %v232 = vmax.f32 %v168, 0.0
  %v233 = vmax.f32 %v169, 0.0
  %v234 = vmax.f32 %v170, 0.0
  %v235 = vmax.f32 %v171, 0.0
  %v236 = vmax.f32 %v172, 0.0
  %v237 = vmax.f32 %v173, 0.0
  %v238 = vmax.f32 %v174, 0.0
  %v239 = vmax.f32 %v175, 0.0
  %v240 = vmax.f32 %v176, 0.0
  %v241 = vmax.f32 %v177, 0.0
  %v242 = vmax.f32 %v178, 0.0
  %v243 = vmax.f32 %v179, 0.0
  %v244 = vmax.f32 %v180, 0.0
  %v245 = vmax.f32 %v181, 0.0
  %v246 = vmax.f32 %v182, 0.0
  %v247 = vmax.f32 %v183, 0.0
  %v248 = vmax.f32 %v184, 0.0
  %v249 = vmax.f32 %v185, 0.0
  %v250 = vmax.f32 %v186, 0.0
  %v251 = vmax.f32 %v187, 0.0
  %v252 = vmax.f32 %v188, 0.0
  %v253 = vmax.f32 %v189, 0.0
  %v254 = vmax.f32 %v190, 0.0
  %v255 = vmax.f32 %v191, 0.0
  %v256 = vmax.f32 %v192, 0.0
  %v257 = vmax.f32 %v193, 0.0
  %v258 = vmax.f32 %v194, 0.0
  %v259 = vmax.f32 %v195, 0.0
  %v260 = vmax.f32 %v196, 0.0
  %v261 = vmax.f32 %v197, 0.0
  %v262 = vmax.f32 %v198, 0.0
  %v263 = vmax.f32 %v199, 0.0
  %v264 = vmax.f32 %v200, 0.0
  %v265 = vmax.f32 %v201, 0.0
  %v266 = vmax.f32 %v202, 0.0
  %v267 = vmax.f32 %v203, 0.0
  %v268 = vmax.f32 %v204, 0.0
  %v269 = vmax.f32 %v205, 0.0
  %v270 = vmax.f32 %v206, 0.0
  %v271 = vmax.f32 %v207, 0.0
  %v272 = vmax.f32 %v208, 0.0
  %v273 = vmax.f32 %v209, 0.0
  %v274 = vmax.f32 %v210, 0.0
  %v275 = vmax.f32 %v211, 0.0
  %v276 = vmax.f32 %v212, 0.0
  %v277 = vmax.f32 %v213, 0.0
  %v278 = vmax.f32 %v214, 0.0
  %v279 = vmax.f32 %v215, 0.0
  %v280 = vmax.f32 %v216, 0.0
  %v281 = vmax.f32 %v217, 0.0
  %v282 = vmax.f32 %v218, 0.0
  %v283 = vmax.f32 %v219, 0.0
  %v284 = vpack.c.bf16 %v221, %v220
  %v285 = vpack.c.bf16 %v223, %v222
  %v286 = vpack.c.bf16 %v225, %v224
  %v287 = vpack.c.bf16 %v227, %v226
  %v288 = vpack.c.bf16 %v229, %v228
  %v289 = vpack.c.bf16 %v231, %v230
  %v290 = vpack.c.bf16 %v233, %v232
  %v291 = vpack.c.bf16 %v235, %v234
  %v292 = vpack.c.bf16 %v237, %v236
  %v293 = vpack.c.bf16 %v239, %v238
  %v294 = vpack.c.bf16 %v241, %v240
  %v295 = vpack.c.bf16 %v243, %v242
  %v296 = vpack.c.bf16 %v245, %v244
  %v297 = vpack.c.bf16 %v247, %v246
  %v298 = vpack.c.bf16 %v249, %v248
  %v299 = vpack.c.bf16 %v251, %v250
  %v300 = vpack.c.bf16 %v253, %v252
  %v301 = vpack.c.bf16 %v255, %v254
  %v302 = vpack.c.bf16 %v257, %v256
  %v303 = vpack.c.bf16 %v259, %v258
  %v304 = vpack.c.bf16 %v261, %v260
  %v305 = vpack.c.bf16 %v263, %v262
  %v306 = vpack.c.bf16 %v265, %v264
  %v307 = vpack.c.bf16 %v267, %v266
  %v308 = vpack.c.bf16 %v269, %v268
  %v309 = vpack.c.bf16 %v271, %v270
  %v310 = vpack.c.bf16 %v273, %v272
  %v311 = vpack.c.bf16 %v275, %v274
  %v312 = vpack.c.bf16 %v277, %v276
  %v313 = vpack.c.bf16 %v279, %v278
  %v314 = vpack.c.bf16 %v281, %v280
  %v315 = vpack.c.bf16 %v283, %v282
  %v348 = vunpack.c.l.b16 %v284
  %v349 = vunpack.c.h.b16 %v284
  %v350 = vunpack.c.l.b16 %v285
  %v351 = vunpack.c.h.b16 %v285
  %v352 = vunpack.c.l.b16 %v286
  %v353 = vunpack.c.h.b16 %v286
  %v354 = vunpack.c.l.b16 %v287
  %v355 = vunpack.c.h.b16 %v287
  %v356 = vunpack.c.l.b16 %v288
  %v357 = vunpack.c.h.b16 %v288
  %v358 = vunpack.c.l.b16 %v289
  %v359 = vunpack.c.h.b16 %v289
  %v360 = vunpack.c.l.b16 %v290
  %v361 = vunpack.c.h.b16 %v290
  %v362 = vunpack.c.l.b16 %v291
  %v363 = vunpack.c.h.b16 %v291
  %v364 = vunpack.c.l.b16 %v292
  %v365 = vunpack.c.h.b16 %v292
  %v366 = vunpack.c.l.b16 %v293
  %v367 = vunpack.c.h.b16 %v293
  %v368 = vunpack.c.l.b16 %v294
  %v369 = vunpack.c.h.b16 %v294
  %v370 = vunpack.c.l.b16 %v295
  %v371 = vunpack.c.h.b16 %v295
  %v372 = vunpack.c.l.b16 %v296
  %v373 = vunpack.c.h.b16 %v296
  %v374 = vunpack.c.l.b16 %v297
  %v375 = vunpack.c.h.b16 %v297
  %v376 = vunpack.c.l.b16 %v298
  %v377 = vunpack.c.h.b16 %v298
  %v378 = vunpack.c.l.b16 %v299
  %v379 = vunpack.c.h.b16 %v299
  %v380 = vunpack.c.l.b16 %v300
  %v381 = vunpack.c.h.b16 %v300
  %v382 = vunpack.c.l.b16 %v301
  %v383 = vunpack.c.h.b16 %v301
  %v384 = vunpack.c.l.b16 %v302
  %v385 = vunpack.c.h.b16 %v302
  %v386 = vunpack.c.l.b16 %v303
  %v387 = vunpack.c.h.b16 %v303
  %v388 = vunpack.c.l.b16 %v304
  %v389 = vunpack.c.h.b16 %v304
  %v390 = vunpack.c.l.b16 %v305
  %v391 = vunpack.c.h.b16 %v305
  %v392 = vunpack.c.l.b16 %v306
  %v393 = vunpack.c.h.b16 %v306
  %v394 = vunpack.c.l.b16 %v307
  %v395 = vunpack.c.h.b16 %v307
  %v396 = vunpack.c.l.b16 %v308
  %v397 = vunpack.c.h.b16 %v308
  %v398 = vunpack.c.l.b16 %v309
  %v399 = vunpack.c.h.b16 %v309
  %v400 = vunpack.c.l.b16 %v310
  %v401 = vunpack.c.h.b16 %v310
  %v402 = vunpack.c.l.b16 %v311
  %v403 = vunpack.c.h.b16 %v311
  %v404 = vunpack.c.l.b16 %v312
  %v405 = vunpack.c.h.b16 %v312
  %v406 = vunpack.c.l.b16 %v313
  %v407 = vunpack.c.h.b16 %v313
  %v408 = vunpack.c.l.b16 %v314
  %v409 = vunpack.c.h.b16 %v314
  %v410 = vunpack.c.l.b16 %v315
  %v411 = vunpack.c.h.b16 %v315
  %v412 = vpack.c.b16 %v348, %v348
  %v413 = vpack.c.b16 %v349, %v349
  %v414 = vpack.c.b16 %v350, %v350
  %v415 = vpack.c.b16 %v351, %v351
  %v416 = vpack.c.b16 %v352, %v352
  %v417 = vpack.c.b16 %v353, %v353
  %v418 = vpack.c.b16 %v354, %v354
  %v419 = vpack.c.b16 %v355, %v355
  %v420 = vpack.c.b16 %v356, %v356
  %v421 = vpack.c.b16 %v357, %v357
  %v422 = vpack.c.b16 %v358, %v358
  %v423 = vpack.c.b16 %v359, %v359
  %v424 = vpack.c.b16 %v360, %v360
  %v425 = vpack.c.b16 %v361, %v361
  %v426 = vpack.c.b16 %v362, %v362
  %v427 = vpack.c.b16 %v363, %v363
  %v428 = vpack.c.b16 %v364, %v364
  %v429 = vpack.c.b16 %v365, %v365
  %v430 = vpack.c.b16 %v366, %v366
  %v431 = vpack.c.b16 %v367, %v367
  %v432 = vpack.c.b16 %v368, %v368
  %v433 = vpack.c.b16 %v369, %v369
  %v434 = vpack.c.b16 %v370, %v370
  %v435 = vpack.c.b16 %v371, %v371
  %v436 = vpack.c.b16 %v372, %v372
  %v437 = vpack.c.b16 %v373, %v373
  %v438 = vpack.c.b16 %v374, %v374
  %v439 = vpack.c.b16 %v375, %v375
  %v440 = vpack.c.b16 %v376, %v376
  %v441 = vpack.c.b16 %v377, %v377
  %v442 = vpack.c.b16 %v378, %v378
  %v443 = vpack.c.b16 %v379, %v379
  %v444 = vpack.c.b16 %v380, %v380
  %v445 = vpack.c.b16 %v381, %v381
  %v446 = vpack.c.b16 %v382, %v382
  %v447 = vpack.c.b16 %v383, %v383
  %v448 = vpack.c.b16 %v384, %v384
  %v449 = vpack.c.b16 %v385, %v385
  %v450 = vpack.c.b16 %v386, %v386
  %v451 = vpack.c.b16 %v387, %v387
  %v452 = vpack.c.b16 %v388, %v388
  %v453 = vpack.c.b16 %v389, %v389
  %v454 = vpack.c.b16 %v390, %v390
  %v455 = vpack.c.b16 %v391, %v391
  %v456 = vpack.c.b16 %v392, %v392
  %v457 = vpack.c.b16 %v393, %v393
  %v458 = vpack.c.b16 %v394, %v394
  %v459 = vpack.c.b16 %v395, %v395
  %v460 = vpack.c.b16 %v396, %v396
  %v461 = vpack.c.b16 %v397, %v397
  %v462 = vpack.c.b16 %v398, %v398
  %v463 = vpack.c.b16 %v399, %v399
  %v464 = vpack.c.b16 %v400, %v400
  %v465 = vpack.c.b16 %v401, %v401
  %v466 = vpack.c.b16 %v402, %v402
  %v467 = vpack.c.b16 %v403, %v403
  %v468 = vpack.c.b16 %v404, %v404
  %v469 = vpack.c.b16 %v405, %v405
  %v470 = vpack.c.b16 %v406, %v406
  %v471 = vpack.c.b16 %v407, %v407
  %v472 = vpack.c.b16 %v408, %v408
  %v473 = vpack.c.b16 %v409, %v409
  %v474 = vpack.c.b16 %v410, %v410
  %v475 = vpack.c.b16 %v411, %v411
  %vm540 = vcmask 27648
  %541 = vst.msk [vmem:[%s3] sm:$0xf] %vm540, %v412
  %542 = vst.msk [vmem:[%s3 + $0x4] sm:$0xf] %vm540, %v413
  %543 = vst.msk [vmem:[%s3 + $0x8] sm:$0xf] %vm540, %v414
  %544 = vst.msk [vmem:[%s3 + $0xc] sm:$0xf] %vm540, %v415
  %545 = vst.msk [vmem:[%s3 + $0x10] sm:$0xf] %vm540, %v416
  %546 = vst.msk [vmem:[%s3 + $0x14] sm:$0xf] %vm540, %v417
  %547 = vst.msk [vmem:[%s3 + $0x18] sm:$0xf] %vm540, %v418
  %548 = vst.msk [vmem:[%s3 + $0x1c] sm:$0xf] %vm540, %v419
  %549 = vst.msk [vmem:[%s3 + $0x20] sm:$0xf] %vm540, %v420
  %550 = vst.msk [vmem:[%s3 + $0x24] sm:$0xf] %vm540, %v421
  %551 = vst.msk [vmem:[%s3 + $0x28] sm:$0xf] %vm540, %v422
  %552 = vst.msk [vmem:[%s3 + $0x2c] sm:$0xf] %vm540, %v423
  %553 = vst.msk [vmem:[%s3 + $0x30] sm:$0xf] %vm540, %v424
  %554 = vst.msk [vmem:[%s3 + $0x34] sm:$0xf] %vm540, %v425
  %555 = vst.msk [vmem:[%s3 + $0x38] sm:$0xf] %vm540, %v426
  %556 = vst.msk [vmem:[%s3 + $0x3c] sm:$0xf] %vm540, %v427
  %557 = vst.msk [vmem:[%s3 + $0x40] sm:$0xf] %vm540, %v428
  %558 = vst.msk [vmem:[%s3 + $0x44] sm:$0xf] %vm540, %v429
  %559 = vst.msk [vmem:[%s3 + $0x48] sm:$0xf] %vm540, %v430
  %560 = vst.msk [vmem:[%s3 + $0x4c] sm:$0xf] %vm540, %v431
  %561 = vst.msk [vmem:[%s3 + $0x50] sm:$0xf] %vm540, %v432
  %562 = vst.msk [vmem:[%s3 + $0x54] sm:$0xf] %vm540, %v433
  %563 = vst.msk [vmem:[%s3 + $0x58] sm:$0xf] %vm540, %v434
  %564 = vst.msk [vmem:[%s3 + $0x5c] sm:$0xf] %vm540, %v435
  %565 = vst.msk [vmem:[%s3 + $0x60] sm:$0xf] %vm540, %v436
  %566 = vst.msk [vmem:[%s3 + $0x64] sm:$0xf] %vm540, %v437
  %567 = vst.msk [vmem:[%s3 + $0x68] sm:$0xf] %vm540, %v438
  %568 = vst.msk [vmem:[%s3 + $0x6c] sm:$0xf] %vm540, %v439
  %569 = vst.msk [vmem:[%s3 + $0x70] sm:$0xf] %vm540, %v440
  %570 = vst.msk [vmem:[%s3 + $0x74] sm:$0xf] %vm540, %v441
  %571 = vst.msk [vmem:[%s3 + $0x78] sm:$0xf] %vm540, %v442
  %572 = vst.msk [vmem:[%s3 + $0x7c] sm:$0xf] %vm540, %v443
  %573 = vst.msk [vmem:[%s3 + $0x80] sm:$0xf] %vm540, %v444
  %574 = vst.msk [vmem:[%s3 + $0x84] sm:$0xf] %vm540, %v445
  %575 = vst.msk [vmem:[%s3 + $0x88] sm:$0xf] %vm540, %v446
  %576 = vst.msk [vmem:[%s3 + $0x8c] sm:$0xf] %vm540, %v447
  %577 = vst.msk [vmem:[%s3 + $0x90] sm:$0xf] %vm540, %v448
  %578 = vst.msk [vmem:[%s3 + $0x94] sm:$0xf] %vm540, %v449
  %579 = vst.msk [vmem:[%s3 + $0x98] sm:$0xf] %vm540, %v450
  %580 = vst.msk [vmem:[%s3 + $0x9c] sm:$0xf] %vm540, %v451
  %581 = vst.msk [vmem:[%s3 + $0xa0] sm:$0xf] %vm540, %v452
  %582 = vst.msk [vmem:[%s3 + $0xa4] sm:$0xf] %vm540, %v453
  %583 = vst.msk [vmem:[%s3 + $0xa8] sm:$0xf] %vm540, %v454
  %584 = vst.msk [vmem:[%s3 + $0xac] sm:$0xf] %vm540, %v455
  %585 = vst.msk [vmem:[%s3 + $0xb0] sm:$0xf] %vm540, %v456
  %586 = vst.msk [vmem:[%s3 + $0xb4] sm:$0xf] %vm540, %v457
  %587 = vst.msk [vmem:[%s3 + $0xb8] sm:$0xf] %vm540, %v458
  %588 = vst.msk [vmem:[%s3 + $0xbc] sm:$0xf] %vm540, %v459
  %589 = vst.msk [vmem:[%s3 + $0xc0] sm:$0xf] %vm540, %v460
  %590 = vst.msk [vmem:[%s3 + $0xc4] sm:$0xf] %vm540, %v461
  %591 = vst.msk [vmem:[%s3 + $0xc8] sm:$0xf] %vm540, %v462
  %592 = vst.msk [vmem:[%s3 + $0xcc] sm:$0xf] %vm540, %v463
  %593 = vst.msk [vmem:[%s3 + $0xd0] sm:$0xf] %vm540, %v464
  %594 = vst.msk [vmem:[%s3 + $0xd4] sm:$0xf] %vm540, %v465
  %595 = vst.msk [vmem:[%s3 + $0xd8] sm:$0xf] %vm540, %v466
  %596 = vst.msk [vmem:[%s3 + $0xdc] sm:$0xf] %vm540, %v467
  %597 = vst.msk [vmem:[%s3 + $0xe0] sm:$0xf] %vm540, %v468
  %598 = vst.msk [vmem:[%s3 + $0xe4] sm:$0xf] %vm540, %v469
  %599 = vst.msk [vmem:[%s3 + $0xe8] sm:$0xf] %vm540, %v470
  %600 = vst.msk [vmem:[%s3 + $0xec] sm:$0xf] %vm540, %v471
  %601 = vst.msk [vmem:[%s3 + $0xf0] sm:$0xf] %vm540, %v472
  %602 = vst.msk [vmem:[%s3 + $0xf4] sm:$0xf] %vm540, %v473
  %603 = vst.msk [vmem:[%s3 + $0xf8] sm:$0xf] %vm540, %v474
  %604 = vst.msk [vmem:[%s3 + $0xfc] sm:$0xf] %vm540, %v475
  // Predicated region
  $region14: #{res_block_standard.5} parent=0 // pred_check
    _
  $region15: #{res_block_standard.5} parent=0 // pred_check_branch
    %606 = sbr.rel (0) target = $region17
  $region16: #{res_block_standard.5} parent=0 // pred_region
    _
  $region17: #{res_block_standard.5} parent=0 // pred_fallthru
    _
  // Predicated region
  $region18: #{res_block_standard.5} parent=0 // pred_check
    _
  $region19: #{res_block_standard.5} parent=0 // pred_check_branch
    %608 = sbr.rel (0) target = $region21
  $region20: #{res_block_standard.5} parent=0 // pred_region
    _
  $region21: #{res_block_standard.5} parent=0 // pred_fallthru
    _

// kernel: res_block_standard.4
$region0: #{res_block_standard.4}
  #allocation0 [shape = 'u32[]', space=smem, size = 0x4, offset = 0x4, fixed_abs, tag = 'smem constant byte address 0x4 - core index']
  #allocation1 [shape = 'u32[144,128]{1,0:T(1,128)}', space=vmem, size = 0x12000, scoped, tag = 'internal scratch']
  %s0 = inlined_call_operand.vmem [shape: bf16[512,48], index: 0, kind: input, shape index: {}]
  %s1 = inlined_call_operand.vmem [shape: bf16[48,128], index: 1, kind: input, shape index: {}]
  %s2 = inlined_call_operand.vmem [shape: f32[512,4], index: 2, kind: output, shape index: {0}]
  %s3 = inlined_call_operand.vmem [shape: f32[1,1,4], index: 3, kind: output, shape index: {1}]
  %s4 = inlined_call_operand.vmem [shape: f32[1,1,4], index: 4, kind: output, shape index: {2}]
  %5 = xla_tuple %s2, %s3, %s4
  %s6 = sld [smem:[#allocation0]]
  $region38: #{res_block_standard.4} parent=0
    _
  %s8 = ssub.s32 1, %s6
  %s9 = scalar_select 0, %s8, %s6
  // Predicated region
  $region2: #{res_block_standard.4} parent=0 // pred_check
    _
  $region3: #{res_block_standard.4} parent=0 // pred_check_branch
    %11 = sbr.rel (0) target = $region5
  $region4: #{res_block_standard.4} parent=0 // pred_region
    %s12 = sadd.s32 0, 0
    %s13 = smul.u32 64, %s12
    %p14 = scmp.lt.s32.totalorder %s13, 63
    %s15 = scalar_select %p14, %s13, 63
    %s16 = smul.addr %s15, 4
    %s17 = scalar_lea.vmem %s0, %s16
    %s18 = sadd.s32 0, 0
    %s19 = smul.u32 64, %s18
  $region5: #{res_block_standard.4} parent=0 // pred_fallthru
    _
  // Predicated region
  $region6: #{res_block_standard.4} parent=0 // pred_check
    _
  $region7: #{res_block_standard.4} parent=0 // pred_check_branch
    %21 = sbr.rel (0) target = $region9
  $region8: #{res_block_standard.4} parent=0 // pred_region
    _
  $region9: #{res_block_standard.4} parent=0 // pred_fallthru
    _
  %s22 = sadd.s32 0, 0
  %s23 = smul.u32 64, %s22
  %p24 = scmp.lt.s32.totalorder %s23, 63
  %s25 = scalar_select %p24, %s23, 63
  %s26 = smul.addr %s25, 4
  %s27 = scalar_lea.vmem %s0, %s26
  %s28 = sadd.s32 0, 0
  %s29 = smul.u32 64, %s28
  %p30 = scmp.lt.s32.totalorder %s29, 63
  %s31 = scalar_select %p30, %s29, 63
  %s32 = smul.addr %s31, 8
  %s33 = scalar_lea.vmem %s2, %s32
  %s34 = sadd.s32 0, 0
  %s35 = smul.u32 64, %s34
  %p36 = scmp.lt.s32.totalorder %s35, 63
  %s37 = scalar_select %p36, %s35, 63
  %s38 = smul.addr %s37, 4
  %s39 = scalar_lea.vmem %s0, %s38
  %s40 = sadd.s32 0, 0
  %s41 = smul.u32 64, %s40
  %s42 = sadd.s32 0, 0
  %s43 = smul.u32 64, %s42
  %p44 = scmp.lt.s32.totalorder %s43, 63
  %s45 = scalar_select %p44, %s43, 63
  %s46 = smul.addr %s45, 8
  %s47 = scalar_lea.vmem %s2, %s46
  %s48 = sadd.s32 0, 0
  %s49 = smul.u32 64, %s48
  %v51 = vld [vmem:[%s39] sm:$0xf]
  %v52 = vld [vmem:[%s39 + $0x4] sm:$0xf]
  %v53 = vld [vmem:[%s39 + $0x8] sm:$0xf]
  %v54 = vld [vmem:[%s39 + $0xc] sm:$0xf]
  %v55 = vld [vmem:[%s39 + $0x10] sm:$0xf]
  %v56 = vld [vmem:[%s39 + $0x14] sm:$0xf]
  %v57 = vld [vmem:[%s39 + $0x18] sm:$0xf]
  %v58 = vld [vmem:[%s39 + $0x1c] sm:$0xf]
  %v59 = vld [vmem:[%s39 + $0x20] sm:$0xf]
  %v60 = vld [vmem:[%s39 + $0x24] sm:$0xf]
  %v61 = vld [vmem:[%s39 + $0x28] sm:$0xf]
  %v62 = vld [vmem:[%s39 + $0x2c] sm:$0xf]
  %v63 = vld [vmem:[%s39 + $0x30] sm:$0xf]
  %v64 = vld [vmem:[%s39 + $0x34] sm:$0xf]
  %v65 = vld [vmem:[%s39 + $0x38] sm:$0xf]
  %v66 = vld [vmem:[%s39 + $0x3c] sm:$0xf]
  %v67 = vld [vmem:[%s39 + $0x40] sm:$0xf]
  %v68 = vld [vmem:[%s39 + $0x44] sm:$0xf]
  %v69 = vld [vmem:[%s39 + $0x48] sm:$0xf]
  %v70 = vld [vmem:[%s39 + $0x4c] sm:$0xf]
  %v71 = vld [vmem:[%s39 + $0x50] sm:$0xf]
  %v72 = vld [vmem:[%s39 + $0x54] sm:$0xf]
  %v73 = vld [vmem:[%s39 + $0x58] sm:$0xf]
  %v74 = vld [vmem:[%s39 + $0x5c] sm:$0xf]
  %v75 = vld [vmem:[%s39 + $0x60] sm:$0xf]
  %v76 = vld [vmem:[%s39 + $0x64] sm:$0xf]
  %v77 = vld [vmem:[%s39 + $0x68] sm:$0xf]
  %v78 = vld [vmem:[%s39 + $0x6c] sm:$0xf]
  %v79 = vld [vmem:[%s39 + $0x70] sm:$0xf]
  %v80 = vld [vmem:[%s39 + $0x74] sm:$0xf]
  %v81 = vld [vmem:[%s39 + $0x78] sm:$0xf]
  %v82 = vld [vmem:[%s39 + $0x7c] sm:$0xf]
  %v83 = vld [vmem:[%s39 + $0x80] sm:$0xf]
  %v84 = vld [vmem:[%s39 + $0x84] sm:$0xf]
  %v85 = vld [vmem:[%s39 + $0x88] sm:$0xf]
  %v86 = vld [vmem:[%s39 + $0x8c] sm:$0xf]
  %v87 = vld [vmem:[%s39 + $0x90] sm:$0xf]
  %v88 = vld [vmem:[%s39 + $0x94] sm:$0xf]
  %v89 = vld [vmem:[%s39 + $0x98] sm:$0xf]
  %v90 = vld [vmem:[%s39 + $0x9c] sm:$0xf]
  %v91 = vld [vmem:[%s39 + $0xa0] sm:$0xf]
  %v92 = vld [vmem:[%s39 + $0xa4] sm:$0xf]
  %v93 = vld [vmem:[%s39 + $0xa8] sm:$0xf]
  %v94 = vld [vmem:[%s39 + $0xac] sm:$0xf]
  %v95 = vld [vmem:[%s39 + $0xb0] sm:$0xf]
  %v96 = vld [vmem:[%s39 + $0xb4] sm:$0xf]
  %v97 = vld [vmem:[%s39 + $0xb8] sm:$0xf]
  %v98 = vld [vmem:[%s39 + $0xbc] sm:$0xf]
  %v99 = vld [vmem:[%s39 + $0xc0] sm:$0xf]
  %v100 = vld [vmem:[%s39 + $0xc4] sm:$0xf]
  %v101 = vld [vmem:[%s39 + $0xc8] sm:$0xf]
  %v102 = vld [vmem:[%s39 + $0xcc] sm:$0xf]
  %v103 = vld [vmem:[%s39 + $0xd0] sm:$0xf]
  %v104 = vld [vmem:[%s39 + $0xd4] sm:$0xf]
  %v105 = vld [vmem:[%s39 + $0xd8] sm:$0xf]
  %v106 = vld [vmem:[%s39 + $0xdc] sm:$0xf]
  %v107 = vld [vmem:[%s39 + $0xe0] sm:$0xf]
  %v108 = vld [vmem:[%s39 + $0xe4] sm:$0xf]
  %v109 = vld [vmem:[%s39 + $0xe8] sm:$0xf]
  %v110 = vld [vmem:[%s39 + $0xec] sm:$0xf]
  %v111 = vld [vmem:[%s39 + $0xf0] sm:$0xf]
  %v112 = vld [vmem:[%s39 + $0xf4] sm:$0xf]
  %v113 = vld [vmem:[%s39 + $0xf8] sm:$0xf]
  %v114 = vld [vmem:[%s39 + $0xfc] sm:$0xf]
  %v115 = vld [vmem:[%s1] sm:$0xf]
  %v116 = vld [vmem:[%s1 + $0x4] sm:$0xf]
  %v117 = vld [vmem:[%s1 + $0x8] sm:$0xf]
  %v118 = vld [vmem:[%s1 + $0xc] sm:$0xf]
  %v119 = vld [vmem:[%s1 + $0x10] sm:$0xf]
  %v120 = vld [vmem:[%s1 + $0x14] sm:$0xf]
  %v185 = vunpack.c.l.b16 %v51
  %v186 = vunpack.c.l.b16 %v52
  %v187 = vunpack.c.l.b16 %v53
  %v188 = vunpack.c.l.b16 %v54
  %v189 = vunpack.c.l.b16 %v55
  %v190 = vunpack.c.l.b16 %v56
  %v191 = vunpack.c.l.b16 %v57
  %v192 = vunpack.c.l.b16 %v58
  %v193 = vunpack.c.l.b16 %v59
  %v194 = vunpack.c.l.b16 %v60
  %v195 = vunpack.c.l.b16 %v61
  %v196 = vunpack.c.l.b16 %v62
  %v197 = vunpack.c.l.b16 %v63
  %v198 = vunpack.c.l.b16 %v64
  %v199 = vunpack.c.l.b16 %v65
  %v200 = vunpack.c.l.b16 %v66
  %v201 = vunpack.c.l.b16 %v67
  %v202 = vunpack.c.l.b16 %v68
  %v203 = vunpack.c.l.b16 %v69
  %v204 = vunpack.c.l.b16 %v70
  %v205 = vunpack.c.l.b16 %v71
  %v206 = vunpack.c.l.b16 %v72
  %v207 = vunpack.c.l.b16 %v73
  %v208 = vunpack.c.l.b16 %v74
  %v209 = vunpack.c.l.b16 %v75
  %v210 = vunpack.c.l.b16 %v76
  %v211 = vunpack.c.l.b16 %v77
  %v212 = vunpack.c.l.b16 %v78
  %v213 = vunpack.c.l.b16 %v79
  %v214 = vunpack.c.l.b16 %v80
  %v215 = vunpack.c.l.b16 %v81
  %v216 = vunpack.c.l.b16 %v82
  %v217 = vunpack.c.l.b16 %v83
  %v218 = vunpack.c.l.b16 %v84
  %v219 = vunpack.c.l.b16 %v85
  %v220 = vunpack.c.l.b16 %v86
  %v221 = vunpack.c.l.b16 %v87
  %v222 = vunpack.c.l.b16 %v88
  %v223 = vunpack.c.l.b16 %v89
  %v224 = vunpack.c.l.b16 %v90
  %v225 = vunpack.c.l.b16 %v91
  %v226 = vunpack.c.l.b16 %v92
  %v227 = vunpack.c.l.b16 %v93
  %v228 = vunpack.c.l.b16 %v94
  %v229 = vunpack.c.l.b16 %v95
  %v230 = vunpack.c.l.b16 %v96
  %v231 = vunpack.c.l.b16 %v97
  %v232 = vunpack.c.l.b16 %v98
  %v233 = vunpack.c.l.b16 %v99
  %v234 = vunpack.c.l.b16 %v100
  %v235 = vunpack.c.l.b16 %v101
  %v236 = vunpack.c.l.b16 %v102
  %v237 = vunpack.c.l.b16 %v103
  %v238 = vunpack.c.l.b16 %v104
  %v239 = vunpack.c.l.b16 %v105
  %v240 = vunpack.c.l.b16 %v106
  %v241 = vunpack.c.l.b16 %v107
  %v242 = vunpack.c.l.b16 %v108
  %v243 = vunpack.c.l.b16 %v109
  %v244 = vunpack.c.l.b16 %v110
  %v245 = vunpack.c.l.b16 %v111
  %v246 = vunpack.c.l.b16 %v112
  %v247 = vunpack.c.l.b16 %v113
  %v248 = vunpack.c.l.b16 %v114
  %v249 = vpack.c.b16 %v186, %v185
  %v250 = vpack.c.b16 %v188, %v187
  %v251 = vpack.c.b16 %v190, %v189
  %v252 = vpack.c.b16 %v192, %v191
  %v253 = vpack.c.b16 %v194, %v193
  %v254 = vpack.c.b16 %v196, %v195
  %v255 = vpack.c.b16 %v198, %v197
  %v256 = vpack.c.b16 %v200, %v199
  %v257 = vpack.c.b16 %v202, %v201
  %v258 = vpack.c.b16 %v204, %v203
  %v259 = vpack.c.b16 %v206, %v205
  %v260 = vpack.c.b16 %v208, %v207
  %v261 = vpack.c.b16 %v210, %v209
  %v262 = vpack.c.b16 %v212, %v211
  %v263 = vpack.c.b16 %v214, %v213
  %v264 = vpack.c.b16 %v216, %v215
  %v265 = vpack.c.b16 %v218, %v217
  %v266 = vpack.c.b16 %v220, %v219
  %v267 = vpack.c.b16 %v222, %v221
  %v268 = vpack.c.b16 %v224, %v223
  %v269 = vpack.c.b16 %v226, %v225
  %v270 = vpack.c.b16 %v228, %v227
  %v271 = vpack.c.b16 %v230, %v229
  %v272 = vpack.c.b16 %v232, %v231
  %v273 = vpack.c.b16 %v234, %v233
  %v274 = vpack.c.b16 %v236, %v235
  %v275 = vpack.c.b16 %v238, %v237
  %v276 = vpack.c.b16 %v240, %v239
  %v277 = vpack.c.b16 %v242, %v241
  %v278 = vpack.c.b16 %v244, %v243
  %v279 = vpack.c.b16 %v246, %v245
  %v280 = vpack.c.b16 %v248, %v247
  %v287 = vunpack.c.l.b16 %v115
  %v288 = vunpack.c.l.b16 %v116
  %v289 = vunpack.c.l.b16 %v117
  %v290 = vunpack.c.l.b16 %v118
  %v291 = vunpack.c.l.b16 %v119
  %v292 = vunpack.c.l.b16 %v120
  %v293 = vpack.c.b16 %v288, %v287
  %v294 = vpack.c.b16 %v290, %v289
  %v295 = vpack.c.b16 %v292, %v291
  %vm299 = vcmask 392192
  %v301 = vsel %vm299, %v249, 0
  %v304 = vsel %vm299, %v250, 0
  %v307 = vsel %vm299, %v251, 0
  %v310 = vsel %vm299, %v252, 0
  %v313 = vsel %vm299, %v253, 0
  %v316 = vsel %vm299, %v254, 0
  %v319 = vsel %vm299, %v255, 0
  %v322 = vsel %vm299, %v256, 0
  %v325 = vsel %vm299, %v257, 0
  %v328 = vsel %vm299, %v258, 0
  %v331 = vsel %vm299, %v259, 0
  %v334 = vsel %vm299, %v260, 0
  %v337 = vsel %vm299, %v261, 0
  %v340 = vsel %vm299, %v262, 0
  %v343 = vsel %vm299, %v263, 0
  %v346 = vsel %vm299, %v264, 0
  %v349 = vsel %vm299, %v265, 0
  %v352 = vsel %vm299, %v266, 0
  %v355 = vsel %vm299, %v267, 0
  %v358 = vsel %vm299, %v268, 0
  %v361 = vsel %vm299, %v269, 0
  %v364 = vsel %vm299, %v270, 0
  %v367 = vsel %vm299, %v271, 0
  %v370 = vsel %vm299, %v272, 0
  %v373 = vsel %vm299, %v273, 0
  %v376 = vsel %vm299, %v274, 0
  %v379 = vsel %vm299, %v275, 0
  %v382 = vsel %vm299, %v276, 0
  %v385 = vsel %vm299, %v277, 0
  %v388 = vsel %vm299, %v278, 0
  %v391 = vsel %vm299, %v279, 0
  %v394 = vsel %vm299, %v280, 0
  %396 = vmatprep.subr.bf16.mxu0 0
  %397 = vmatpush1.bf16.msra.mxu0 %v293
  %398 = vmatprep.subr.bf16.mxu0 0
  %399 = vmatpush1.bf16.msra.mxu0 %v294
  %400 = vmatprep.subr.bf16.mxu0 0
  %401 = vmatpush1.bf16.msra.mxu0 %v295
  %402 = vmatprep.subr.bf16.mxu0 0
  %403 = vmatpush1.bf16.msra.mxu0 0
  %404 = vmatprep.subr.bf16.mxu0 0
  %405 = vmatpush1.bf16.msra.mxu0 0
  %406 = vmatprep.subr.bf16.mxu0 0
  %407 = vmatpush1.bf16.msra.mxu0 0
  %408 = vmatprep.subr.bf16.mxu0 0
  %409 = vmatpush1.bf16.msra.mxu0 0
  %410 = vmatprep.subr.bf16.mxu0 0
  %411 = vmatpush1.bf16.msra.mxu0 0
  %412 = vmatprep.subr.bf16.mxu0 0
  %413 = vmatpush1.bf16.msra.mxu0 0
  %414 = vmatprep.subr.bf16.mxu0 0
  %415 = vmatpush1.bf16.msra.mxu0 0
  %416 = vmatprep.subr.bf16.mxu0 0
  %417 = vmatpush1.bf16.msra.mxu0 0
  %418 = vmatprep.subr.bf16.mxu0 0
  %419 = vmatpush1.bf16.msra.mxu0 0
  %420 = vmatprep.subr.bf16.mxu0 0
  %421 = vmatpush1.bf16.msra.mxu0 0
  %422 = vmatprep.subr.bf16.mxu0 0
  %423 = vmatpush1.bf16.msra.mxu0 0
  %424 = vmatprep.subr.bf16.mxu0 0
  %425 = vmatpush1.bf16.msra.mxu0 0
  %426 = vmatprep.subr.bf16.mxu0 0
  %427 = vmatpush1.bf16.msra.mxu0 0
  %428 = vmatprep.mubr.bf16.mxu0 0
  %429 = vmatmul.mubr.bf16.gmra.mrb[0].mxu0 %v301
  %v430 = vpop.f32.mrb[0].mxu0
  %v431 = vadd.f32 0.0, %v430
  %v432 = vpop.f32.mrb[0].mxu0
  %v433 = vpop.f32.mrb[0].mxu0
  %v434 = vadd.f32 0.0, %v433
  %v435 = vpop.f32.mrb[0].mxu0
  %436 = vmatprep.mubr.bf16.mxu0 0
  %437 = vmatmul.mubr.bf16.gmra.mrb[0].mxu0 %v304
  %v438 = vpop.f32.mrb[0].mxu0
  %v439 = vadd.f32 0.0, %v438
  %v440 = vpop.f32.mrb[0].mxu0
  %v441 = vpop.f32.mrb[0].mxu0
  %v442 = vadd.f32 0.0, %v441
  %v443 = vpop.f32.mrb[0].mxu0
  %444 = vmatprep.mubr.bf16.mxu0 0
  %445 = vmatmul.mubr.bf16.gmra.mrb[0].mxu0 %v307
  %v446 = vpop.f32.mrb[0].mxu0
  %v447 = vadd.f32 0.0, %v446
  %v448 = vpop.f32.mrb[0].mxu0
  %v449 = vpop.f32.mrb[0].mxu0
  %v450 = vadd.f32 0.0, %v449
  %v451 = vpop.f32.mrb[0].mxu0
  %452 = vmatprep.mubr.bf16.mxu0 0
  %453 = vmatmul.mubr.bf16.gmra.mrb[0].mxu0 %v310
  %v454 = vpop.f32.mrb[0].mxu0
  %v455 = vadd.f32 0.0, %v454
  %v456 = vpop.f32.mrb[0].mxu0
  %v457 = vpop.f32.mrb[0].mxu0
  %v458 = vadd.f32 0.0, %v457
  %v459 = vpop.f32.mrb[0].mxu0
  %460 = vmatprep.mubr.bf16.mxu0 0
  %461 = vmatmul.mubr.bf16.gmra.mrb[0].mxu0 %v313
  %v462 = vpop.f32.mrb[0].mxu0
  %v463 = vadd.f32 0.0, %v462
  %v464 = vpop.f32.mrb[0].mxu0
  %v465 = vpop.f32.mrb[0].mxu0
  %v466 = vadd.f32 0.0, %v465
  %v467 = vpop.f32.mrb[0].mxu0
  %468 = vmatprep.mubr.bf16.mxu0 0
  %469 = vmatmul.mubr.bf16.gmra.mrb[0].mxu0 %v316
  %v470 = vpop.f32.mrb[0].mxu0
  %v471 = vadd.f32 0.0, %v470
  %v472 = vpop.f32.mrb[0].mxu0
  %v473 = vpop.f32.mrb[0].mxu0
  %v474 = vadd.f32 0.0, %v473
  %v475 = vpop.f32.mrb[0].mxu0
  %476 = vmatprep.mubr.bf16.mxu0 0
  %477 = vmatmul.mubr.bf16.gmra.mrb[0].mxu0 %v319
  %v478 = vpop.f32.mrb[0].mxu0
  %v479 = vadd.f32 0.0, %v478
  %v480 = vpop.f32.mrb[0].mxu0
  %v481 = vpop.f32.mrb[0].mxu0
  %v482 = vadd.f32 0.0, %v481
  %v483 = vpop.f32.mrb[0].mxu0
  %484 = vmatprep.mubr.bf16.mxu0 0
  %485 = vmatmul.mubr.bf16.gmra.mrb[0].mxu0 %v322
  %v486 = vpop.f32.mrb[0].mxu0
  %v487 = vadd.f32 0.0, %v486
  %v488 = vpop.f32.mrb[0].mxu0
  %v489 = vpop.f32.mrb[0].mxu0
  %v490 = vadd.f32 0.0, %v489
  %v491 = vpop.f32.mrb[0].mxu0
  %492 = vmatprep.mubr.bf16.mxu0 0
  %493 = vmatmul.mubr.bf16.gmra.mrb[0].mxu0 %v325
  %v494 = vpop.f32.mrb[0].mxu0
  %v495 = vadd.f32 0.0, %v494
  %v496 = vpop.f32.mrb[0].mxu0
  %v497 = vpop.f32.mrb[0].mxu0
  %v498 = vadd.f32 0.0, %v497
  %v499 = vpop.f32.mrb[0].mxu0
  %500 = vmatprep.mubr.bf16.mxu0 0
  %501 = vmatmul.mubr.bf16.gmra.mrb[0].mxu0 %v328
  %v502 = vpop.f32.mrb[0].mxu0
  %v503 = vadd.f32 0.0, %v502
  %v504 = vpop.f32.mrb[0].mxu0
  %v505 = vpop.f32.mrb[0].mxu0
  %v506 = vadd.f32 0.0, %v505
  %v507 = vpop.f32.mrb[0].mxu0
  %508 = vmatprep.mubr.bf16.mxu0 0
  %509 = vmatmul.mubr.bf16.gmra.mrb[0].mxu0 %v331
  %v510 = vpop.f32.mrb[0].mxu0
  %v511 = vadd.f32 0.0, %v510
  %v512 = vpop.f32.mrb[0].mxu0
  %v513 = vpop.f32.mrb[0].mxu0
  %v514 = vadd.f32 0.0, %v513
  %v515 = vpop.f32.mrb[0].mxu0
  %516 = vmatprep.mubr.bf16.mxu0 0
  %517 = vmatmul.mubr.bf16.gmra.mrb[0].mxu0 %v334
  %v518 = vpop.f32.mrb[0].mxu0
  %v519 = vadd.f32 0.0, %v518
  %v520 = vpop.f32.mrb[0].mxu0
  %v521 = vpop.f32.mrb[0].mxu0
  %v522 = vadd.f32 0.0, %v521
  %v523 = vpop.f32.mrb[0].mxu0
  %524 = vmatprep.mubr.bf16.mxu0 0
  %525 = vmatmul.mubr.bf16.gmra.mrb[0].mxu0 %v337
  %v526 = vpop.f32.mrb[0].mxu0
  %v527 = vadd.f32 0.0, %v526
  %v528 = vpop.f32.mrb[0].mxu0
  %v529 = vpop.f32.mrb[0].mxu0
  %v530 = vadd.f32 0.0, %v529
  %v531 = vpop.f32.mrb[0].mxu0
  %532 = vmatprep.mubr.bf16.mxu0 0
  %533 = vmatmul.mubr.bf16.gmra.mrb[0].mxu0 %v340
  %v534 = vpop.f32.mrb[0].mxu0
  %v535 = vadd.f32 0.0, %v534
  %v536 = vpop.f32.mrb[0].mxu0
  %v537 = vpop.f32.mrb[0].mxu0
  %v538 = vadd.f32 0.0, %v537
  %v539 = vpop.f32.mrb[0].mxu0
  %540 = vmatprep.mubr.bf16.mxu0 0
  %541 = vmatmul.mubr.bf16.gmra.mrb[0].mxu0 %v343
  %v542 = vpop.f32.mrb[0].mxu0
  %v543 = vadd.f32 0.0, %v542
  %v544 = vpop.f32.mrb[0].mxu0
  %v545 = vpop.f32.mrb[0].mxu0
  %v546 = vadd.f32 0.0, %v545
  %v547 = vpop.f32.mrb[0].mxu0
  %548 = vmatprep.mubr.bf16.mxu0 0
  %549 = vmatmul.mubr.bf16.gmra.mrb[0].mxu0 %v346
  %v550 = vpop.f32.mrb[0].mxu0
  %v551 = vadd.f32 0.0, %v550
  %v552 = vpop.f32.mrb[0].mxu0
  %v553 = vpop.f32.mrb[0].mxu0
  %v554 = vadd.f32 0.0, %v553
  %v555 = vpop.f32.mrb[0].mxu0
  %556 = vmatprep.mubr.bf16.mxu0 0
  %557 = vmatmul.mubr.bf16.gmra.mrb[0].mxu0 %v349
  %v558 = vpop.f32.mrb[0].mxu0
  %v559 = vadd.f32 0.0, %v558
  %v560 = vpop.f32.mrb[0].mxu0
  %v561 = vpop.f32.mrb[0].mxu0
  %v562 = vadd.f32 0.0, %v561
  %v563 = vpop.f32.mrb[0].mxu0
  %564 = vmatprep.mubr.bf16.mxu0 0
  %565 = vmatmul.mubr.bf16.gmra.mrb[0].mxu0 %v352
  %v566 = vpop.f32.mrb[0].mxu0
  %v567 = vadd.f32 0.0, %v566
  %v568 = vpop.f32.mrb[0].mxu0
  %v569 = vpop.f32.mrb[0].mxu0
  %v570 = vadd.f32 0.0, %v569
  %v571 = vpop.f32.mrb[0].mxu0
  %572 = vmatprep.mubr.bf16.mxu0 0
  %573 = vmatmul.mubr.bf16.gmra.mrb[0].mxu0 %v355
  %v574 = vpop.f32.mrb[0].mxu0
  %v575 = vadd.f32 0.0, %v574
  %v576 = vpop.f32.mrb[0].mxu0
  %v577 = vpop.f32.mrb[0].mxu0
  %v578 = vadd.f32 0.0, %v577
  %v579 = vpop.f32.mrb[0].mxu0
  %580 = vmatprep.mubr.bf16.mxu0 0
  %581 = vmatmul.mubr.bf16.gmra.mrb[0].mxu0 %v358
  %v582 = vpop.f32.mrb[0].mxu0
  %v583 = vadd.f32 0.0, %v582
  %v584 = vpop.f32.mrb[0].mxu0
  %v585 = vpop.f32.mrb[0].mxu0
  %v586 = vadd.f32 0.0, %v585
  %v587 = vpop.f32.mrb[0].mxu0
  %588 = vmatprep.mubr.bf16.mxu0 0
  %589 = vmatmul.mubr.bf16.gmra.mrb[0].mxu0 %v361
  %v590 = vpop.f32.mrb[0].mxu0
  %v591 = vadd.f32 0.0, %v590
  %v592 = vpop.f32.mrb[0].mxu0
  %v593 = vpop.f32.mrb[0].mxu0
  %v594 = vadd.f32 0.0, %v593
  %v595 = vpop.f32.mrb[0].mxu0
  %596 = vmatprep.mubr.bf16.mxu0 0
  %597 = vmatmul.mubr.bf16.gmra.mrb[0].mxu0 %v364
  %v598 = vpop.f32.mrb[0].mxu0
  %v599 = vadd.f32 0.0, %v598
  %v600 = vpop.f32.mrb[0].mxu0
  %v601 = vpop.f32.mrb[0].mxu0
  %v602 = vadd.f32 0.0, %v601
  %v603 = vpop.f32.mrb[0].mxu0
  %604 = vmatprep.mubr.bf16.mxu0 0
  %605 = vmatmul.mubr.bf16.gmra.mrb[0].mxu0 %v367
  %v606 = vpop.f32.mrb[0].mxu0
  %v607 = vadd.f32 0.0, %v606
  %v608 = vpop.f32.mrb[0].mxu0
  %v609 = vpop.f32.mrb[0].mxu0
  %v610 = vadd.f32 0.0, %v609
  %v611 = vpop.f32.mrb[0].mxu0
  %612 = vmatprep.mubr.bf16.mxu0 0
  %613 = vmatmul.mubr.bf16.gmra.mrb[0].mxu0 %v370
  %v614 = vpop.f32.mrb[0].mxu0
  %v615 = vadd.f32 0.0, %v614
  %v616 = vpop.f32.mrb[0].mxu0
  %v617 = vpop.f32.mrb[0].mxu0
  %v618 = vadd.f32 0.0, %v617
  %v619 = vpop.f32.mrb[0].mxu0
  %620 = vmatprep.mubr.bf16.mxu0 0
  %621 = vmatmul.mubr.bf16.gmra.mrb[0].mxu0 %v373
  %v622 = vpop.f32.mrb[0].mxu0
  %v623 = vadd.f32 0.0, %v622
  %v624 = vpop.f32.mrb[0].mxu0
  %v625 = vpop.f32.mrb[0].mxu0
  %v626 = vadd.f32 0.0, %v625
  %v627 = vpop.f32.mrb[0].mxu0
  %628 = vmatprep.mubr.bf16.mxu0 0
  %629 = vmatmul.mubr.bf16.gmra.mrb[0].mxu0 %v376
  %v630 = vpop.f32.mrb[0].mxu0
  %v631 = vadd.f32 0.0, %v630
  %v632 = vpop.f32.mrb[0].mxu0
  %v633 = vpop.f32.mrb[0].mxu0
  %v634 = vadd.f32 0.0, %v633
  %v635 = vpop.f32.mrb[0].mxu0
  %636 = vmatprep.mubr.bf16.mxu0 0
  %637 = vmatmul.mubr.bf16.gmra.mrb[0].mxu0 %v379
  %v638 = vpop.f32.mrb[0].mxu0
  %v639 = vadd.f32 0.0, %v638
  %v640 = vpop.f32.mrb[0].mxu0
  %v641 = vpop.f32.mrb[0].mxu0
  %v642 = vadd.f32 0.0, %v641
  %v643 = vpop.f32.mrb[0].mxu0
  %644 = vmatprep.mubr.bf16.mxu0 0
  %645 = vmatmul.mubr.bf16.gmra.mrb[0].mxu0 %v382
  %v646 = vpop.f32.mrb[0].mxu0
  %v647 = vadd.f32 0.0, %v646
  %v648 = vpop.f32.mrb[0].mxu0
  %v649 = vpop.f32.mrb[0].mxu0
  %v650 = vadd.f32 0.0, %v649
  %v651 = vpop.f32.mrb[0].mxu0
  %652 = vmatprep.mubr.bf16.mxu0 0
  %653 = vmatmul.mubr.bf16.gmra.mrb[0].mxu0 %v385
  %v654 = vpop.f32.mrb[0].mxu0
  %v655 = vadd.f32 0.0, %v654
  %v656 = vpop.f32.mrb[0].mxu0
  %v657 = vpop.f32.mrb[0].mxu0
  %v658 = vadd.f32 0.0, %v657
  %v659 = vpop.f32.mrb[0].mxu0
  %660 = vmatprep.mubr.bf16.mxu0 0
  %661 = vmatmul.mubr.bf16.gmra.mrb[0].mxu0 %v388
  %v662 = vpop.f32.mrb[0].mxu0
  %v663 = vadd.f32 0.0, %v662
  %v664 = vpop.f32.mrb[0].mxu0
  %v665 = vpop.f32.mrb[0].mxu0
  %v666 = vadd.f32 0.0, %v665
  %v667 = vpop.f32.mrb[0].mxu0
  %668 = vmatprep.mubr.bf16.mxu0 0
  %669 = vmatmul.mubr.bf16.gmra.mrb[0].mxu0 %v391
  %v670 = vpop.f32.mrb[0].mxu0
  %v671 = vadd.f32 0.0, %v670
  %v672 = vpop.f32.mrb[0].mxu0
  %v673 = vpop.f32.mrb[0].mxu0
  %v674 = vadd.f32 0.0, %v673
  %v675 = vpop.f32.mrb[0].mxu0
  %676 = vmatprep.mubr.bf16.mxu0 0
  %677 = vmatmul.mubr.bf16.gmra.mrb[0].mxu0 %v394
  %v678 = vpop.f32.mrb[0].mxu0
  %v679 = vadd.f32 0.0, %v678
  %v680 = vpop.f32.mrb[0].mxu0
  %v681 = vpop.f32.mrb[0].mxu0
  %v682 = vadd.f32 0.0, %v681
  %v683 = vpop.f32.mrb[0].mxu0
  %684 = vdwg.mxu0
  %vm685 = vcmask 31744
  %686 = vst.msk [vmem:[%s47] sm:$0xff] %vm685, %v431
  %687 = vst.msk [vmem:[%s47 + $0x8] sm:$0xff] %vm685, %v434
  %688 = vst.msk [vmem:[%s47 + $0x10] sm:$0xff] %vm685, %v439
  %689 = vst.msk [vmem:[%s47 + $0x18] sm:$0xff] %vm685, %v442
  %690 = vst.msk [vmem:[%s47 + $0x20] sm:$0xff] %vm685, %v447
  %691 = vst.msk [vmem:[%s47 + $0x28] sm:$0xff] %vm685, %v450
  %692 = vst.msk [vmem:[%s47 + $0x30] sm:$0xff] %vm685, %v455
  %693 = vst.msk [vmem:[%s47 + $0x38] sm:$0xff] %vm685, %v458
  %694 = vst.msk [vmem:[%s47 + $0x40] sm:$0xff] %vm685, %v463
  %695 = vst.msk [vmem:[%s47 + $0x48] sm:$0xff] %vm685, %v466
  %696 = vst.msk [vmem:[%s47 + $0x50] sm:$0xff] %vm685, %v471
  %697 = vst.msk [vmem:[%s47 + $0x58] sm:$0xff] %vm685, %v474
  %698 = vst.msk [vmem:[%s47 + $0x60] sm:$0xff] %vm685, %v479
  %699 = vst.msk [vmem:[%s47 + $0x68] sm:$0xff] %vm685, %v482
  %700 = vst.msk [vmem:[%s47 + $0x70] sm:$0xff] %vm685, %v487
  %701 = vst.msk [vmem:[%s47 + $0x78] sm:$0xff] %vm685, %v490
  %702 = vst.msk [vmem:[%s47 + $0x80] sm:$0xff] %vm685, %v495
  %703 = vst.msk [vmem:[%s47 + $0x88] sm:$0xff] %vm685, %v498
  %704 = vst.msk [vmem:[%s47 + $0x90] sm:$0xff] %vm685, %v503
  %705 = vst.msk [vmem:[%s47 + $0x98] sm:$0xff] %vm685, %v506
  %706 = vst.msk [vmem:[%s47 + $0xa0] sm:$0xff] %vm685, %v511
  %707 = vst.msk [vmem:[%s47 + $0xa8] sm:$0xff] %vm685, %v514
  %708 = vst.msk [vmem:[%s47 + $0xb0] sm:$0xff] %vm685, %v519
  %709 = vst.msk [vmem:[%s47 + $0xb8] sm:$0xff] %vm685, %v522
  %710 = vst.msk [vmem:[%s47 + $0xc0] sm:$0xff] %vm685, %v527
  %711 = vst.msk [vmem:[%s47 + $0xc8] sm:$0xff] %vm685, %v530
  %712 = vst.msk [vmem:[%s47 + $0xd0] sm:$0xff] %vm685, %v535
  %713 = vst.msk [vmem:[%s47 + $0xd8] sm:$0xff] %vm685, %v538
  %714 = vst.msk [vmem:[%s47 + $0xe0] sm:$0xff] %vm685, %v543
  %715 = vst.msk [vmem:[%s47 + $0xe8] sm:$0xff] %vm685, %v546
  %716 = vst.msk [vmem:[%s47 + $0xf0] sm:$0xff] %vm685, %v551
  %717 = vst.msk [vmem:[%s47 + $0xf8] sm:$0xff] %vm685, %v554
  %718 = vst.msk [vmem:[%s47 + $0x100] sm:$0xff] %vm685, %v559
  %719 = vst.msk [vmem:[%s47 + $0x108] sm:$0xff] %vm685, %v562
  %720 = vst.msk [vmem:[%s47 + $0x110] sm:$0xff] %vm685, %v567
  %721 = vst.msk [vmem:[%s47 + $0x118] sm:$0xff] %vm685, %v570
  %722 = vst.msk [vmem:[%s47 + $0x120] sm:$0xff] %vm685, %v575
  %723 = vst.msk [vmem:[%s47 + $0x128] sm:$0xff] %vm685, %v578
  %724 = vst.msk [vmem:[%s47 + $0x130] sm:$0xff] %vm685, %v583
  %725 = vst.msk [vmem:[%s47 + $0x138] sm:$0xff] %vm685, %v586
  %726 = vst.msk [vmem:[%s47 + $0x140] sm:$0xff] %vm685, %v591
  %727 = vst.msk [vmem:[%s47 + $0x148] sm:$0xff] %vm685, %v594
  %728 = vst.msk [vmem:[%s47 + $0x150] sm:$0xff] %vm685, %v599
  %729 = vst.msk [vmem:[%s47 + $0x158] sm:$0xff] %vm685, %v602
  %730 = vst.msk [vmem:[%s47 + $0x160] sm:$0xff] %vm685, %v607
  %731 = vst.msk [vmem:[%s47 + $0x168] sm:$0xff] %vm685, %v610
  %732 = vst.msk [vmem:[%s47 + $0x170] sm:$0xff] %vm685, %v615
  %733 = vst.msk [vmem:[%s47 + $0x178] sm:$0xff] %vm685, %v618
  %734 = vst.msk [vmem:[%s47 + $0x180] sm:$0xff] %vm685, %v623
  %735 = vst.msk [vmem:[%s47 + $0x188] sm:$0xff] %vm685, %v626
  %736 = vst.msk [vmem:[%s47 + $0x190] sm:$0xff] %vm685, %v631
  %737 = vst.msk [vmem:[%s47 + $0x198] sm:$0xff] %vm685, %v634
  %738 = vst.msk [vmem:[%s47 + $0x1a0] sm:$0xff] %vm685, %v639
  %739 = vst.msk [vmem:[%s47 + $0x1a8] sm:$0xff] %vm685, %v642
  %740 = vst.msk [vmem:[%s47 + $0x1b0] sm:$0xff] %vm685, %v647
  %741 = vst.msk [vmem:[%s47 + $0x1b8] sm:$0xff] %vm685, %v650
  %742 = vst.msk [vmem:[%s47 + $0x1c0] sm:$0xff] %vm685, %v655
  %743 = vst.msk [vmem:[%s47 + $0x1c8] sm:$0xff] %vm685, %v658
  %744 = vst.msk [vmem:[%s47 + $0x1d0] sm:$0xff] %vm685, %v663
  %745 = vst.msk [vmem:[%s47 + $0x1d8] sm:$0xff] %vm685, %v666
  %746 = vst.msk [vmem:[%s47 + $0x1e0] sm:$0xff] %vm685, %v671
  %747 = vst.msk [vmem:[%s47 + $0x1e8] sm:$0xff] %vm685, %v674
  %748 = vst.msk [vmem:[%s47 + $0x1f0] sm:$0xff] %vm685, %v679
  %749 = vst.msk [vmem:[%s47 + $0x1f8] sm:$0xff] %vm685, %v682
  %p750 = scmp.eq.s32.totalorder 0, 0
  // Predicated region
  $region10: #{res_block_standard.4} parent=0 // pred_check
    %p751 = pneg %p750
  $region11: #{res_block_standard.4} parent=0 // pred_check_branch
    %753 = sbr.rel (%p751) target = $region13
  $region12: #{res_block_standard.4} parent=0 // pred_region
    %vm754 = vcmask 24576
    %755 = vst.msk [vmem:[%s3] sm:$0x1] %vm754, 0.0
    %756 = vst.msk [vmem:[%s4] sm:$0x1] %vm754, 0.0
  $region13: #{res_block_standard.4} parent=0 // pred_fallthru
    _
  %v757 = vld [vmem:[%s3] sm:$0x1]
  %v758 = vsel %vm685, %v431, 0.0
  %v759 = vsel %vm685, %v434, 0.0
  %v760 = vadd.f32 %v758, %v759
  %v761 = vsel %vm685, %v439, 0.0
  %v762 = vadd.f32 %v760, %v761
  %v763 = vsel %vm685, %v442, 0.0
  %v764 = vadd.f32 %v762, %v763
  %v765 = vsel %vm685, %v447, 0.0
  %v766 = vadd.f32 %v764, %v765
  %v767 = vsel %vm685, %v450, 0.0
  %v768 = vadd.f32 %v766, %v767
  %v769 = vsel %vm685, %v455, 0.0
  %v770 = vadd.f32 %v768, %v769
  %v771 = vsel %vm685, %v458, 0.0
  %v772 = vadd.f32 %v770, %v771
  %v773 = vsel %vm685, %v463, 0.0
  %v774 = vadd.f32 %v772, %v773
  %v775 = vsel %vm685, %v466, 0.0
  %v776 = vadd.f32 %v774, %v775
  %v777 = vsel %vm685, %v471, 0.0
  %v778 = vadd.f32 %v776, %v777
  %v779 = vsel %vm685, %v474, 0.0
  %v780 = vadd.f32 %v778, %v779
  %v781 = vsel %vm685, %v479, 0.0
  %v782 = vadd.f32 %v780, %v781
  %v783 = vsel %vm685, %v482, 0.0
  %v784 = vadd.f32 %v782, %v783
  %v785 = vsel %vm685, %v487, 0.0
  %v786 = vadd.f32 %v784, %v785
  %v787 = vsel %vm685, %v490, 0.0
  %v788 = vadd.f32 %v786, %v787
  %v789 = vsel %vm685, %v495, 0.0
  %v790 = vadd.f32 %v788, %v789
  %v791 = vsel %vm685, %v498, 0.0
  %v792 = vadd.f32 %v790, %v791
  %v793 = vsel %vm685, %v503, 0.0
  %v794 = vadd.f32 %v792, %v793
  %v795 = vsel %vm685, %v506, 0.0
  %v796 = vadd.f32 %v794, %v795
  %v797 = vsel %vm685, %v511, 0.0
  %v798 = vadd.f32 %v796, %v797
  %v799 = vsel %vm685, %v514, 0.0
  %v800 = vadd.f32 %v798, %v799
  %v801 = vsel %vm685, %v519, 0.0
  %v802 = vadd.f32 %v800, %v801
  %v803 = vsel %vm685, %v522, 0.0
  %v804 = vadd.f32 %v802, %v803
  %v805 = vsel %vm685, %v527, 0.0
  %v806 = vadd.f32 %v804, %v805
  %v807 = vsel %vm685, %v530, 0.0
  %v808 = vadd.f32 %v806, %v807
  %v809 = vsel %vm685, %v535, 0.0
  %v810 = vadd.f32 %v808, %v809
  %v811 = vsel %vm685, %v538, 0.0
  %v812 = vadd.f32 %v810, %v811
  %v813 = vsel %vm685, %v543, 0.0
  %v814 = vadd.f32 %v812, %v813
  %v815 = vsel %vm685, %v546, 0.0
  %v816 = vadd.f32 %v814, %v815
  %v817 = vsel %vm685, %v551, 0.0
  %v818 = vadd.f32 %v816, %v817
  %v819 = vsel %vm685, %v554, 0.0
  %v820 = vadd.f32 %v818, %v819
  %v821 = vsel %vm685, %v559, 0.0
  %v822 = vadd.f32 %v820, %v821
  %v823 = vsel %vm685, %v562, 0.0
  %v824 = vadd.f32 %v822, %v823
  %v825 = vsel %vm685, %v567, 0.0
  %v826 = vadd.f32 %v824, %v825
  %v827 = vsel %vm685, %v570, 0.0
  %v828 = vadd.f32 %v826, %v827
  %v829 = vsel %vm685, %v575, 0.0
  %v830 = vadd.f32 %v828, %v829
  %v831 = vsel %vm685, %v578, 0.0
  %v832 = vadd.f32 %v830, %v831
  %v833 = vsel %vm685, %v583, 0.0
  %v834 = vadd.f32 %v832, %v833
  %v835 = vsel %vm685, %v586, 0.0
  %v836 = vadd.f32 %v834, %v835
  %v837 = vsel %vm685, %v591, 0.0
  %v838 = vadd.f32 %v836, %v837
  %v839 = vsel %vm685, %v594, 0.0
  %v840 = vadd.f32 %v838, %v839
  %v841 = vsel %vm685, %v599, 0.0
  %v842 = vadd.f32 %v840, %v841
  %v843 = vsel %vm685, %v602, 0.0
  %v844 = vadd.f32 %v842, %v843
  %v845 = vsel %vm685, %v607, 0.0
  %v846 = vadd.f32 %v844, %v845
  %v847 = vsel %vm685, %v610, 0.0
  %v848 = vadd.f32 %v846, %v847
  %v849 = vsel %vm685, %v615, 0.0
  %v850 = vadd.f32 %v848, %v849
  %v851 = vsel %vm685, %v618, 0.0
  %v852 = vadd.f32 %v850, %v851
  %v853 = vsel %vm685, %v623, 0.0
  %v854 = vadd.f32 %v852, %v853
  %v855 = vsel %vm685, %v626, 0.0
  %v856 = vadd.f32 %v854, %v855
  %v857 = vsel %vm685, %v631, 0.0
  %v858 = vadd.f32 %v856, %v857
  %v859 = vsel %vm685, %v634, 0.0
  %v860 = vadd.f32 %v858, %v859
  %v861 = vsel %vm685, %v639, 0.0
  %v862 = vadd.f32 %v860, %v861
  %v863 = vsel %vm685, %v642, 0.0
  %v864 = vadd.f32 %v862, %v863
  %v865 = vsel %vm685, %v647, 0.0
  %v866 = vadd.f32 %v864, %v865
  %v867 = vsel %vm685, %v650, 0.0
  %v868 = vadd.f32 %v866, %v867
  %v869 = vsel %vm685, %v655, 0.0
  %v870 = vadd.f32 %v868, %v869
  %v871 = vsel %vm685, %v658, 0.0
  %v872 = vadd.f32 %v870, %v871
  %v873 = vsel %vm685, %v663, 0.0
  %v874 = vadd.f32 %v872, %v873
  %v875 = vsel %vm685, %v666, 0.0
  %v876 = vadd.f32 %v874, %v875
  %v877 = vsel %vm685, %v671, 0.0
  %v878 = vadd.f32 %v876, %v877
  %v879 = vsel %vm685, %v674, 0.0
  %v880 = vadd.f32 %v878, %v879
  %v881 = vsel %vm685, %v679, 0.0
  %v882 = vadd.f32 %v880, %v881
  %v883 = vsel %vm685, %v682, 0.0
  %v884 = vadd.f32 %v882, %v883
  %v885 = vrot.slane %v884, 4
  %v886 = vadd.f32 %v884, %v885
  %v887 = vrot.slane %v886, 2
  %v888 = vadd.f32 %v886, %v887
  %v889 = vrot.slane %v888, 1
  %v890 = vadd.f32 %v888, %v889
  %v891 = vadd.f32 %v757, %v890
  %vm892 = vcmask 24576
  %893 = vst.msk [vmem:[%s3] sm:$0x1] %vm892, %v891
  %v894 = vld [vmem:[%s4] sm:$0x1]
  %v895 = vmul.f32 %v431, %v431
  %v896 = vmul.f32 %v434, %v434
  %v897 = vmul.f32 %v439, %v439
  %v898 = vmul.f32 %v442, %v442
  %v899 = vmul.f32 %v447, %v447
  %v900 = vmul.f32 %v450, %v450
  %v901 = vmul.f32 %v455, %v455
  %v902 = vmul.f32 %v458, %v458
  %v903 = vmul.f32 %v463, %v463
  %v904 = vmul.f32 %v466, %v466
  %v905 = vmul.f32 %v471, %v471
  %v906 = vmul.f32 %v474, %v474
  %v907 = vmul.f32 %v479, %v479
  %v908 = vmul.f32 %v482, %v482
  %v909 = vmul.f32 %v487, %v487
  %v910 = vmul.f32 %v490, %v490
  %v911 = vmul.f32 %v495, %v495
  %v912 = vmul.f32 %v498, %v498
  %v913 = vmul.f32 %v503, %v503
  %v914 = vmul.f32 %v506, %v506
  %v915 = vmul.f32 %v511, %v511
  %v916 = vmul.f32 %v514, %v514
  %v917 = vmul.f32 %v519, %v519
  %v918 = vmul.f32 %v522, %v522
  %v919 = vmul.f32 %v527, %v527
  %v920 = vmul.f32 %v530, %v530
  %v921 = vmul.f32 %v535, %v535
  %v922 = vmul.f32 %v538, %v538
  %v923 = vmul.f32 %v543, %v543
  %v924 = vmul.f32 %v546, %v546
  %v925 = vmul.f32 %v551, %v551
  %v926 = vmul.f32 %v554, %v554
  %v927 = vmul.f32 %v559, %v559
  %v928 = vmul.f32 %v562, %v562
  %v929 = vmul.f32 %v567, %v567
  %v930 = vmul.f32 %v570, %v570
  %v931 = vmul.f32 %v575, %v575
  %v932 = vmul.f32 %v578, %v578
  %v933 = vmul.f32 %v583, %v583
  %v934 = vmul.f32 %v586, %v586
  %v935 = vmul.f32 %v591, %v591
  %v936 = vmul.f32 %v594, %v594
  %v937 = vmul.f32 %v599, %v599
  %v938 = vmul.f32 %v602, %v602
  %v939 = vmul.f32 %v607, %v607
  %v940 = vmul.f32 %v610, %v610
  %v941 = vmul.f32 %v615, %v615
  %v942 = vmul.f32 %v618, %v618
  %v943 = vmul.f32 %v623, %v623
  %v944 = vmul.f32 %v626, %v626
  %v945 = vmul.f32 %v631, %v631
  %v946 = vmul.f32 %v634, %v634
  %v947 = vmul.f32 %v639, %v639
  %v948 = vmul.f32 %v642, %v642
  %v949 = vmul.f32 %v647, %v647
  %v950 = vmul.f32 %v650, %v650
  %v951 = vmul.f32 %v655, %v655
  %v952 = vmul.f32 %v658, %v658
  %v953 = vmul.f32 %v663, %v663
  %v954 = vmul.f32 %v666, %v666
  %v955 = vmul.f32 %v671, %v671
  %v956 = vmul.f32 %v674, %v674
  %v957 = vmul.f32 %v679, %v679
  %v958 = vmul.f32 %v682, %v682
  %v959 = vsel %vm685, %v895, 0.0
  %v960 = vsel %vm685, %v896, 0.0
  %v961 = vadd.f32 %v959, %v960
  %v962 = vsel %vm685, %v897, 0.0
  %v963 = vadd.f32 %v961, %v962
  %v964 = vsel %vm685, %v898, 0.0
  %v965 = vadd.f32 %v963, %v964
  %v966 = vsel %vm685, %v899, 0.0
  %v967 = vadd.f32 %v965, %v966
  %v968 = vsel %vm685, %v900, 0.0
  %v969 = vadd.f32 %v967, %v968
  %v970 = vsel %vm685, %v901, 0.0
  %v971 = vadd.f32 %v969, %v970
  %v972 = vsel %vm685, %v902, 0.0
  %v973 = vadd.f32 %v971, %v972
  %v974 = vsel %vm685, %v903, 0.0
  %v975 = vadd.f32 %v973, %v974
  %v976 = vsel %vm685, %v904, 0.0
  %v977 = vadd.f32 %v975, %v976
  %v978 = vsel %vm685, %v905, 0.0
  %v979 = vadd.f32 %v977, %v978
  %v980 = vsel %vm685, %v906, 0.0
  %v981 = vadd.f32 %v979, %v980
  %v982 = vsel %vm685, %v907, 0.0
  %v983 = vadd.f32 %v981, %v982
  %v984 = vsel %vm685, %v908, 0.0
  %v985 = vadd.f32 %v983, %v984
  %v986 = vsel %vm685, %v909, 0.0
  %v987 = vadd.f32 %v985, %v986
  %v988 = vsel %vm685, %v910, 0.0
  %v989 = vadd.f32 %v987, %v988
  %v990 = vsel %vm685, %v911, 0.0
  %v991 = vadd.f32 %v989, %v990
  %v992 = vsel %vm685, %v912, 0.0
  %v993 = vadd.f32 %v991, %v992
  %v994 = vsel %vm685, %v913, 0.0
  %v995 = vadd.f32 %v993, %v994
  %v996 = vsel %vm685, %v914, 0.0
  %v997 = vadd.f32 %v995, %v996
  %v998 = vsel %vm685, %v915, 0.0
  %v999 = vadd.f32 %v997, %v998
  %v1000 = vsel %vm685, %v916, 0.0
  %v1001 = vadd.f32 %v999, %v1000
  %v1002 = vsel %vm685, %v917, 0.0
  %v1003 = vadd.f32 %v1001, %v1002
  %v1004 = vsel %vm685, %v918, 0.0
  %v1005 = vadd.f32 %v1003, %v1004
  %v1006 = vsel %vm685, %v919, 0.0
  %v1007 = vadd.f32 %v1005, %v1006
  %v1008 = vsel %vm685, %v920, 0.0
  %v1009 = vadd.f32 %v1007, %v1008
  %v1010 = vsel %vm685, %v921, 0.0
  %v1011 = vadd.f32 %v1009, %v1010
  %v1012 = vsel %vm685, %v922, 0.0
  %v1013 = vadd.f32 %v1011, %v1012
  %v1014 = vsel %vm685, %v923, 0.0
  %v1015 = vadd.f32 %v1013, %v1014
  %v1016 = vsel %vm685, %v924, 0.0
  %v1017 = vadd.f32 %v1015, %v1016
  %v1018 = vsel %vm685, %v925, 0.0
  %v1019 = vadd.f32 %v1017, %v1018
  %v1020 = vsel %vm685, %v926, 0.0
  %v1021 = vadd.f32 %v1019, %v1020
  %v1022 = vsel %vm685, %v927, 0.0
  %v1023 = vadd.f32 %v1021, %v1022
  %v1024 = vsel %vm685, %v928, 0.0
  %v1025 = vadd.f32 %v1023, %v1024
  %v1026 = vsel %vm685, %v929, 0.0
  %v1027 = vadd.f32 %v1025, %v1026
  %v1028 = vsel %vm685, %v930, 0.0
  %v1029 = vadd.f32 %v1027, %v1028
  %v1030 = vsel %vm685, %v931, 0.0
  %v1031 = vadd.f32 %v1029, %v1030
  %v1032 = vsel %vm685, %v932, 0.0
  %v1033 = vadd.f32 %v1031, %v1032
  %v1034 = vsel %vm685, %v933, 0.0
  %v1035 = vadd.f32 %v1033, %v1034
  %v1036 = vsel %vm685, %v934, 0.0
  %v1037 = vadd.f32 %v1035, %v1036
  %v1038 = vsel %vm685, %v935, 0.0
  %v1039 = vadd.f32 %v1037, %v1038
  %v1040 = vsel %vm685, %v936, 0.0
  %v1041 = vadd.f32 %v1039, %v1040
  %v1042 = vsel %vm685, %v937, 0.0
  %v1043 = vadd.f32 %v1041, %v1042
  %v1044 = vsel %vm685, %v938, 0.0
  %v1045 = vadd.f32 %v1043, %v1044
  %v1046 = vsel %vm685, %v939, 0.0
  %v1047 = vadd.f32 %v1045, %v1046
  %v1048 = vsel %vm685, %v940, 0.0
  %v1049 = vadd.f32 %v1047, %v1048
  %v1050 = vsel %vm685, %v941, 0.0
  %v1051 = vadd.f32 %v1049, %v1050
  %v1052 = vsel %vm685, %v942, 0.0
  %v1053 = vadd.f32 %v1051, %v1052
  %v1054 = vsel %vm685, %v943, 0.0
  %v1055 = vadd.f32 %v1053, %v1054
  %v1056 = vsel %vm685, %v944, 0.0
  %v1057 = vadd.f32 %v1055, %v1056
  %v1058 = vsel %vm685, %v945, 0.0
  %v1059 = vadd.f32 %v1057, %v1058
  %v1060 = vsel %vm685, %v946, 0.0
  %v1061 = vadd.f32 %v1059, %v1060
  %v1062 = vsel %vm685, %v947, 0.0
  %v1063 = vadd.f32 %v1061, %v1062
  %v1064 = vsel %vm685, %v948, 0.0
  %v1065 = vadd.f32 %v1063, %v1064
  %v1066 = vsel %vm685, %v949, 0.0
  %v1067 = vadd.f32 %v1065, %v1066
  %v1068 = vsel %vm685, %v950, 0.0
  %v1069 = vadd.f32 %v1067, %v1068
  %v1070 = vsel %vm685, %v951, 0.0
  %v1071 = vadd.f32 %v1069, %v1070
  %v1072 = vsel %vm685, %v952, 0.0
  %v1073 = vadd.f32 %v1071, %v1072
  %v1074 = vsel %vm685, %v953, 0.0
  %v1075 = vadd.f32 %v1073, %v1074
  %v1076 = vsel %vm685, %v954, 0.0
  %v1077 = vadd.f32 %v1075, %v1076
  %v1078 = vsel %vm685, %v955, 0.0
  %v1079 = vadd.f32 %v1077, %v1078
  %v1080 = vsel %vm685, %v956, 0.0
  %v1081 = vadd.f32 %v1079, %v1080
  %v1082 = vsel %vm685, %v957, 0.0
  %v1083 = vadd.f32 %v1081, %v1082
  %v1084 = vsel %vm685, %v958, 0.0
  %v1085 = vadd.f32 %v1083, %v1084
  %v1086 = vrot.slane %v1085, 4
  %v1087 = vadd.f32 %v1085, %v1086
  %v1088 = vrot.slane %v1087, 2
  %v1089 = vadd.f32 %v1087, %v1088
  %v1090 = vrot.slane %v1089, 1
  %v1091 = vadd.f32 %v1089, %v1090
  %v1092 = vadd.f32 %v894, %v1091
  %1093 = vst.msk [vmem:[%s4] sm:$0x1] %vm892, %v1092
  %s1094 = sadd.s32 0, 0
  %s1095 = smul.u32 64, %s1094
  %p1096 = scmp.lt.s32.totalorder %s1095, 63
  %s1097 = scalar_select %p1096, %s1095, 63
  %s1098 = smul.addr %s1097, 8
  %s1099 = scalar_lea.vmem %s2, %s1098
  // Predicated region
  $region14: #{res_block_standard.4} parent=0 // pred_check
    _
  $region15: #{res_block_standard.4} parent=0 // pred_check_branch
    %1101 = sbr.rel (0) target = $region17
  $region16: #{res_block_standard.4} parent=0 // pred_region
    %s1102 = sadd.s32 0, 0
    %s1103 = smul.u32 64, %s1102
  $region17: #{res_block_standard.4} parent=0 // pred_fallthru
    _
  // Predicated region
  $region18: #{res_block_standard.4} parent=0 // pred_check
    _
  $region19: #{res_block_standard.4} parent=0 // pred_check_branch
    %1105 = sbr.rel (0) target = $region21
  $region20: #{res_block_standard.4} parent=0 // pred_region
    _
  $region21: #{res_block_standard.4} parent=0 // pred_fallthru
    _
  // Predicated region
  $region22: #{res_block_standard.4} parent=0 // pred_check
    _
  $region23: #{res_block_standard.4} parent=0 // pred_check_branch
    %1107 = sbr.rel (0) target = $region25
  $region24: #{res_block_standard.4} parent=0 // pred_region
    _
  $region25: #{res_block_standard.4} parent=0 // pred_fallthru
    _
  // Predicated region
  $region26: #{res_block_standard.4} parent=0 // pred_check
    _
  $region27: #{res_block_standard.4} parent=0 // pred_check_branch
    %1109 = sbr.rel (0) target = $region29
  $region28: #{res_block_standard.4} parent=0 // pred_region
    %s1110 = sadd.s32 0, 0
    %s1111 = smul.u32 64, %s1110
    %p1112 = scmp.lt.s32.totalorder %s1111, 63
    %s1113 = scalar_select %p1112, %s1111, 63
    %s1114 = smul.addr %s1113, 8
    %s1115 = scalar_lea.vmem %s2, %s1114
  $region29: #{res_block_standard.4} parent=0 // pred_fallthru
    _
  // Predicated region
  $region30: #{res_block_standard.4} parent=0 // pred_check
    _
  $region31: #{res_block_standard.4} parent=0 // pred_check_branch
    %1117 = sbr.rel (0) target = $region33
  $region32: #{res_block_standard.4} parent=0 // pred_region
    _
  $region33: #{res_block_standard.4} parent=0 // pred_fallthru
    _
  // Predicated region
  $region34: #{res_block_standard.4} parent=0 // pred_check
    _
  $region35: #{res_block_standard.4} parent=0 // pred_check_branch
    %1119 = sbr.rel (0) target = $region37
  $region36: #{res_block_standard.4} parent=0 // pred_region
    _
  $region37: #{res_block_standard.4} parent=0 // pred_fallthru
    _

// kernel: res_block_standard.7
$region0: #{res_block_standard.7}
  #allocation0 [shape = 'u32[]', space=smem, size = 0x4, offset = 0x4, fixed_abs, tag = 'smem constant byte address 0x4 - core index']
  #allocation1 [shape = 'u32[144,128]{1,0:T(1,128)}', space=vmem, size = 0x12000, scoped, tag = 'internal scratch']
  %s0 = inlined_call_operand.vmem [shape: f32[512,4], index: 0, kind: input, shape index: {}]
  %s1 = inlined_call_operand.vmem [shape: f32[1,4], index: 1, kind: input, shape index: {}]
  %s2 = inlined_call_operand.vmem [shape: f32[1,4], index: 2, kind: input, shape index: {}]
  %s3 = inlined_call_operand.vmem [shape: f32[512,4], index: 3, kind: input, shape index: {}, may-alias: {3,4}]
  %s4 = inlined_call_operand.vmem [shape: f32[512,4], index: 4, kind: output, shape index: {}, may-alias: {3,4}]
  %s5 = sld [smem:[#allocation0]]
  $region26: #{res_block_standard.7} parent=0
    _
  %s7 = ssub.s32 1, %s5
  %s8 = scalar_select 0, %s7, %s5
  // Predicated region
  $region2: #{res_block_standard.7} parent=0 // pred_check
    _
  $region3: #{res_block_standard.7} parent=0 // pred_check_branch
    %10 = sbr.rel (0) target = $region5
  $region4: #{res_block_standard.7} parent=0 // pred_region
    _
  $region5: #{res_block_standard.7} parent=0 // pred_fallthru
    _
  // Predicated region
  $region6: #{res_block_standard.7} parent=0 // pred_check
    _
  $region7: #{res_block_standard.7} parent=0 // pred_check_branch
    %12 = sbr.rel (0) target = $region9
  $region8: #{res_block_standard.7} parent=0 // pred_region
    _
  $region9: #{res_block_standard.7} parent=0 // pred_fallthru
    _
  // Predicated region
  $region10: #{res_block_standard.7} parent=0 // pred_check
    _
  $region11: #{res_block_standard.7} parent=0 // pred_check_branch
    %14 = sbr.rel (0) target = $region13
  $region12: #{res_block_standard.7} parent=0 // pred_region
    _
  $region13: #{res_block_standard.7} parent=0 // pred_fallthru
    _
  // Predicated region
  $region14: #{res_block_standard.7} parent=0 // pred_check
    _
  $region15: #{res_block_standard.7} parent=0 // pred_check_branch
    %16 = sbr.rel (0) target = $region17
  $region16: #{res_block_standard.7} parent=0 // pred_region
    _
  $region17: #{res_block_standard.7} parent=0 // pred_fallthru
    _
  %v17 = vld [vmem:[%s0] sm:$0xff]
  %v18 = vld [vmem:[%s0 + $0x8] sm:$0xff]
  %v19 = vld [vmem:[%s0 + $0x10] sm:$0xff]
  %v20 = vld [vmem:[%s0 + $0x18] sm:$0xff]
  %v21 = vld [vmem:[%s0 + $0x20] sm:$0xff]
  %v22 = vld [vmem:[%s0 + $0x28] sm:$0xff]
  %v23 = vld [vmem:[%s0 + $0x30] sm:$0xff]
  %v24 = vld [vmem:[%s0 + $0x38] sm:$0xff]
  %v25 = vld [vmem:[%s0 + $0x40] sm:$0xff]
  %v26 = vld [vmem:[%s0 + $0x48] sm:$0xff]
  %v27 = vld [vmem:[%s0 + $0x50] sm:$0xff]
  %v28 = vld [vmem:[%s0 + $0x58] sm:$0xff]
  %v29 = vld [vmem:[%s0 + $0x60] sm:$0xff]
  %v30 = vld [vmem:[%s0 + $0x68] sm:$0xff]
  %v31 = vld [vmem:[%s0 + $0x70] sm:$0xff]
  %v32 = vld [vmem:[%s0 + $0x78] sm:$0xff]
  %v33 = vld [vmem:[%s0 + $0x80] sm:$0xff]
  %v34 = vld [vmem:[%s0 + $0x88] sm:$0xff]
  %v35 = vld [vmem:[%s0 + $0x90] sm:$0xff]
  %v36 = vld [vmem:[%s0 + $0x98] sm:$0xff]
  %v37 = vld [vmem:[%s0 + $0xa0] sm:$0xff]
  %v38 = vld [vmem:[%s0 + $0xa8] sm:$0xff]
  %v39 = vld [vmem:[%s0 + $0xb0] sm:$0xff]
  %v40 = vld [vmem:[%s0 + $0xb8] sm:$0xff]
  %v41 = vld [vmem:[%s0 + $0xc0] sm:$0xff]
  %v42 = vld [vmem:[%s0 + $0xc8] sm:$0xff]
  %v43 = vld [vmem:[%s0 + $0xd0] sm:$0xff]
  %v44 = vld [vmem:[%s0 + $0xd8] sm:$0xff]
  %v45 = vld [vmem:[%s0 + $0xe0] sm:$0xff]
  %v46 = vld [vmem:[%s0 + $0xe8] sm:$0xff]
  %v47 = vld [vmem:[%s0 + $0xf0] sm:$0xff]
  %v48 = vld [vmem:[%s0 + $0xf8] sm:$0xff]
  %v49 = vld [vmem:[%s0 + $0x100] sm:$0xff]
  %v50 = vld [vmem:[%s0 + $0x108] sm:$0xff]
  %v51 = vld [vmem:[%s0 + $0x110] sm:$0xff]
  %v52 = vld [vmem:[%s0 + $0x118] sm:$0xff]
  %v53 = vld [vmem:[%s0 + $0x120] sm:$0xff]
  %v54 = vld [vmem:[%s0 + $0x128] sm:$0xff]
  %v55 = vld [vmem:[%s0 + $0x130] sm:$0xff]
  %v56 = vld [vmem:[%s0 + $0x138] sm:$0xff]
  %v57 = vld [vmem:[%s0 + $0x140] sm:$0xff]
  %v58 = vld [vmem:[%s0 + $0x148] sm:$0xff]
  %v59 = vld [vmem:[%s0 + $0x150] sm:$0xff]
  %v60 = vld [vmem:[%s0 + $0x158] sm:$0xff]
  %v61 = vld [vmem:[%s0 + $0x160] sm:$0xff]
  %v62 = vld [vmem:[%s0 + $0x168] sm:$0xff]
  %v63 = vld [vmem:[%s0 + $0x170] sm:$0xff]
  %v64 = vld [vmem:[%s0 + $0x178] sm:$0xff]
  %v65 = vld [vmem:[%s0 + $0x180] sm:$0xff]
  %v66 = vld [vmem:[%s0 + $0x188] sm:$0xff]
  %v67 = vld [vmem:[%s0 + $0x190] sm:$0xff]
  %v68 = vld [vmem:[%s0 + $0x198] sm:$0xff]
  %v69 = vld [vmem:[%s0 + $0x1a0] sm:$0xff]
  %v70 = vld [vmem:[%s0 + $0x1a8] sm:$0xff]
  %v71 = vld [vmem:[%s0 + $0x1b0] sm:$0xff]
  %v72 = vld [vmem:[%s0 + $0x1b8] sm:$0xff]
  %v73 = vld [vmem:[%s0 + $0x1c0] sm:$0xff]
  %v74 = vld [vmem:[%s0 + $0x1c8] sm:$0xff]
  %v75 = vld [vmem:[%s0 + $0x1d0] sm:$0xff]
  %v76 = vld [vmem:[%s0 + $0x1d8] sm:$0xff]
  %v77 = vld [vmem:[%s0 + $0x1e0] sm:$0xff]
  %v78 = vld [vmem:[%s0 + $0x1e8] sm:$0xff]
  %v79 = vld [vmem:[%s0 + $0x1f0] sm:$0xff]
  %v80 = vld [vmem:[%s0 + $0x1f8] sm:$0xff]
  %v81 = vld [vmem:[%s1] sm:$0x1]
  %v83 = vlaneseq
  %v84 = vshrl.u32 %v83, 7
  %v85 = vsub.s32 0, %v84
  %v86 = vrot.slane %v81, %v85
  %v88 = vmul.f32 %v17, %v86
  %v89 = vmul.f32 %v18, %v86
  %v90 = vmul.f32 %v19, %v86
  %v91 = vmul.f32 %v20, %v86
  %v92 = vmul.f32 %v21, %v86
  %v93 = vmul.f32 %v22, %v86
  %v94 = vmul.f32 %v23, %v86
  %v95 = vmul.f32 %v24, %v86
  %v96 = vmul.f32 %v25, %v86
  %v97 = vmul.f32 %v26, %v86
  %v98 = vmul.f32 %v27, %v86
  %v99 = vmul.f32 %v28, %v86
  %v100 = vmul.f32 %v29, %v86
  %v101 = vmul.f32 %v30, %v86
  %v102 = vmul.f32 %v31, %v86
  %v103 = vmul.f32 %v32, %v86
  %v104 = vmul.f32 %v33, %v86
  %v105 = vmul.f32 %v34, %v86
  %v106 = vmul.f32 %v35, %v86
  %v107 = vmul.f32 %v36, %v86
  %v108 = vmul.f32 %v37, %v86
  %v109 = vmul.f32 %v38, %v86
  %v110 = vmul.f32 %v39, %v86
  %v111 = vmul.f32 %v40, %v86
  %v112 = vmul.f32 %v41, %v86
  %v113 = vmul.f32 %v42, %v86
  %v114 = vmul.f32 %v43, %v86
  %v115 = vmul.f32 %v44, %v86
  %v116 = vmul.f32 %v45, %v86
  %v117 = vmul.f32 %v46, %v86
  %v118 = vmul.f32 %v47, %v86
  %v119 = vmul.f32 %v48, %v86
  %v120 = vmul.f32 %v49, %v86
  %v121 = vmul.f32 %v50, %v86
  %v122 = vmul.f32 %v51, %v86
  %v123 = vmul.f32 %v52, %v86
  %v124 = vmul.f32 %v53, %v86
  %v125 = vmul.f32 %v54, %v86
  %v126 = vmul.f32 %v55, %v86
  %v127 = vmul.f32 %v56, %v86
  %v128 = vmul.f32 %v57, %v86
  %v129 = vmul.f32 %v58, %v86
  %v130 = vmul.f32 %v59, %v86
  %v131 = vmul.f32 %v60, %v86
  %v132 = vmul.f32 %v61, %v86
  %v133 = vmul.f32 %v62, %v86
  %v134 = vmul.f32 %v63, %v86
  %v135 = vmul.f32 %v64, %v86
  %v136 = vmul.f32 %v65, %v86
  %v137 = vmul.f32 %v66, %v86
  %v138 = vmul.f32 %v67, %v86
  %v139 = vmul.f32 %v68, %v86
  %v140 = vmul.f32 %v69, %v86
  %v141 = vmul.f32 %v70, %v86
  %v142 = vmul.f32 %v71, %v86
  %v143 = vmul.f32 %v72, %v86
  %v144 = vmul.f32 %v73, %v86
  %v145 = vmul.f32 %v74, %v86
  %v146 = vmul.f32 %v75, %v86
  %v147 = vmul.f32 %v76, %v86
  %v148 = vmul.f32 %v77, %v86
  %v149 = vmul.f32 %v78, %v86
  %v150 = vmul.f32 %v79, %v86
  %v151 = vmul.f32 %v80, %v86
  %v152 = vld [vmem:[%s2] sm:$0x1]
  %v154 = vlaneseq
  %v155 = vshrl.u32 %v154, 7
  %v156 = vsub.s32 0, %v155
  %v157 = vrot.slane %v152, %v156
  %v159 = vadd.f32 %v88, %v157
  %v160 = vadd.f32 %v89, %v157
  %v161 = vadd.f32 %v90, %v157
  %v162 = vadd.f32 %v91, %v157
  %v163 = vadd.f32 %v92, %v157
  %v164 = vadd.f32 %v93, %v157
  %v165 = vadd.f32 %v94, %v157
  %v166 = vadd.f32 %v95, %v157
  %v167 = vadd.f32 %v96, %v157
  %v168 = vadd.f32 %v97, %v157
  %v169 = vadd.f32 %v98, %v157
  %v170 = vadd.f32 %v99, %v157
  %v171 = vadd.f32 %v100, %v157
  %v172 = vadd.f32 %v101, %v157
  %v173 = vadd.f32 %v102, %v157
  %v174 = vadd.f32 %v103, %v157
  %v175 = vadd.f32 %v104, %v157
  %v176 = vadd.f32 %v105, %v157
  %v177 = vadd.f32 %v106, %v157
  %v178 = vadd.f32 %v107, %v157
  %v179 = vadd.f32 %v108, %v157
  %v180 = vadd.f32 %v109, %v157
  %v181 = vadd.f32 %v110, %v157
  %v182 = vadd.f32 %v111, %v157
  %v183 = vadd.f32 %v112, %v157
  %v184 = vadd.f32 %v113, %v157
  %v185 = vadd.f32 %v114, %v157
  %v186 = vadd.f32 %v115, %v157
  %v187 = vadd.f32 %v116, %v157
  %v188 = vadd.f32 %v117, %v157
  %v189 = vadd.f32 %v118, %v157
  %v190 = vadd.f32 %v119, %v157
  %v191 = vadd.f32 %v120, %v157
  %v192 = vadd.f32 %v121, %v157
  %v193 = vadd.f32 %v122, %v157
  %v194 = vadd.f32 %v123, %v157
  %v195 = vadd.f32 %v124, %v157
  %v196 = vadd.f32 %v125, %v157
  %v197 = vadd.f32 %v126, %v157
  %v198 = vadd.f32 %v127, %v157
  %v199 = vadd.f32 %v128, %v157
  %v200 = vadd.f32 %v129, %v157
  %v201 = vadd.f32 %v130, %v157
  %v202 = vadd.f32 %v131, %v157
  %v203 = vadd.f32 %v132, %v157
  %v204 = vadd.f32 %v133, %v157
  %v205 = vadd.f32 %v134, %v157
  %v206 = vadd.f32 %v135, %v157
  %v207 = vadd.f32 %v136, %v157
  %v208 = vadd.f32 %v137, %v157
  %v209 = vadd.f32 %v138, %v157
  %v210 = vadd.f32 %v139, %v157
  %v211 = vadd.f32 %v140, %v157
  %v212 = vadd.f32 %v141, %v157
  %v213 = vadd.f32 %v142, %v157
  %v214 = vadd.f32 %v143, %v157
  %v215 = vadd.f32 %v144, %v157
  %v216 = vadd.f32 %v145, %v157
  %v217 = vadd.f32 %v146, %v157
  %v218 = vadd.f32 %v147, %v157
  %v219 = vadd.f32 %v148, %v157
  %v220 = vadd.f32 %v149, %v157
  %v221 = vadd.f32 %v150, %v157
  %v222 = vadd.f32 %v151, %v157
  %v223 = vld [vmem:[%s3] sm:$0xff]
  %v224 = vld [vmem:[%s3 + $0x8] sm:$0xff]
  %v225 = vld [vmem:[%s3 + $0x10] sm:$0xff]
  %v226 = vld [vmem:[%s3 + $0x18] sm:$0xff]
  %v227 = vld [vmem:[%s3 + $0x20] sm:$0xff]
  %v228 = vld [vmem:[%s3 + $0x28] sm:$0xff]
  %v229 = vld [vmem:[%s3 + $0x30] sm:$0xff]
  %v230 = vld [vmem:[%s3 + $0x38] sm:$0xff]
  %v231 = vld [vmem:[%s3 + $0x40] sm:$0xff]
  %v232 = vld [vmem:[%s3 + $0x48] sm:$0xff]
  %v233 = vld [vmem:[%s3 + $0x50] sm:$0xff]
  %v234 = vld [vmem:[%s3 + $0x58] sm:$0xff]
  %v235 = vld [vmem:[%s3 + $0x60] sm:$0xff]
  %v236 = vld [vmem:[%s3 + $0x68] sm:$0xff]
  %v237 = vld [vmem:[%s3 + $0x70] sm:$0xff]
  %v238 = vld [vmem:[%s3 + $0x78] sm:$0xff]
  %v239 = vld [vmem:[%s3 + $0x80] sm:$0xff]
  %v240 = vld [vmem:[%s3 + $0x88] sm:$0xff]
  %v241 = vld [vmem:[%s3 + $0x90] sm:$0xff]
  %v242 = vld [vmem:[%s3 + $0x98] sm:$0xff]
  %v243 = vld [vmem:[%s3 + $0xa0] sm:$0xff]
  %v244 = vld [vmem:[%s3 + $0xa8] sm:$0xff]
  %v245 = vld [vmem:[%s3 + $0xb0] sm:$0xff]
  %v246 = vld [vmem:[%s3 + $0xb8] sm:$0xff]
  %v247 = vld [vmem:[%s3 + $0xc0] sm:$0xff]
  %v248 = vld [vmem:[%s3 + $0xc8] sm:$0xff]
  %v249 = vld [vmem:[%s3 + $0xd0] sm:$0xff]
  %v250 = vld [vmem:[%s3 + $0xd8] sm:$0xff]
  %v251 = vld [vmem:[%s3 + $0xe0] sm:$0xff]
  %v252 = vld [vmem:[%s3 + $0xe8] sm:$0xff]
  %v253 = vld [vmem:[%s3 + $0xf0] sm:$0xff]
  %v254 = vld [vmem:[%s3 + $0xf8] sm:$0xff]
  %v255 = vld [vmem:[%s3 + $0x100] sm:$0xff]
  %v256 = vld [vmem:[%s3 + $0x108] sm:$0xff]
  %v257 = vld [vmem:[%s3 + $0x110] sm:$0xff]
  %v258 = vld [vmem:[%s3 + $0x118] sm:$0xff]
  %v259 = vld [vmem:[%s3 + $0x120] sm:$0xff]
  %v260 = vld [vmem:[%s3 + $0x128] sm:$0xff]
  %v261 = vld [vmem:[%s3 + $0x130] sm:$0xff]
  %v262 = vld [vmem:[%s3 + $0x138] sm:$0xff]
  %v263 = vld [vmem:[%s3 + $0x140] sm:$0xff]
  %v264 = vld [vmem:[%s3 + $0x148] sm:$0xff]
  %v265 = vld [vmem:[%s3 + $0x150] sm:$0xff]
  %v266 = vld [vmem:[%s3 + $0x158] sm:$0xff]
  %v267 = vld [vmem:[%s3 + $0x160] sm:$0xff]
  %v268 = vld [vmem:[%s3 + $0x168] sm:$0xff]
  %v269 = vld [vmem:[%s3 + $0x170] sm:$0xff]
  %v270 = vld [vmem:[%s3 + $0x178] sm:$0xff]
  %v271 = vld [vmem:[%s3 + $0x180] sm:$0xff]
  %v272 = vld [vmem:[%s3 + $0x188] sm:$0xff]
  %v273 = vld [vmem:[%s3 + $0x190] sm:$0xff]
  %v274 = vld [vmem:[%s3 + $0x198] sm:$0xff]
  %v275 = vld [vmem:[%s3 + $0x1a0] sm:$0xff]
  %v276 = vld [vmem:[%s3 + $0x1a8] sm:$0xff]
  %v277 = vld [vmem:[%s3 + $0x1b0] sm:$0xff]
  %v278 = vld [vmem:[%s3 + $0x1b8] sm:$0xff]
  %v279 = vld [vmem:[%s3 + $0x1c0] sm:$0xff]
  %v280 = vld [vmem:[%s3 + $0x1c8] sm:$0xff]
  %v281 = vld [vmem:[%s3 + $0x1d0] sm:$0xff]
  %v282 = vld [vmem:[%s3 + $0x1d8] sm:$0xff]
  %v283 = vld [vmem:[%s3 + $0x1e0] sm:$0xff]
  %v284 = vld [vmem:[%s3 + $0x1e8] sm:$0xff]
  %v285 = vld [vmem:[%s3 + $0x1f0] sm:$0xff]
  %v286 = vld [vmem:[%s3 + $0x1f8] sm:$0xff]
  %v287 = vadd.f32 %v159, %v223
  %v288 = vadd.f32 %v160, %v224
  %v289 = vadd.f32 %v161, %v225
  %v290 = vadd.f32 %v162, %v226
  %v291 = vadd.f32 %v163, %v227
  %v292 = vadd.f32 %v164, %v228
  %v293 = vadd.f32 %v165, %v229
  %v294 = vadd.f32 %v166, %v230
  %v295 = vadd.f32 %v167, %v231
  %v296 = vadd.f32 %v168, %v232
  %v297 = vadd.f32 %v169, %v233
  %v298 = vadd.f32 %v170, %v234
  %v299 = vadd.f32 %v171, %v235
  %v300 = vadd.f32 %v172, %v236
  %v301 = vadd.f32 %v173, %v237
  %v302 = vadd.f32 %v174, %v238
  %v303 = vadd.f32 %v175, %v239
  %v304 = vadd.f32 %v176, %v240
  %v305 = vadd.f32 %v177, %v241
  %v306 = vadd.f32 %v178, %v242
  %v307 = vadd.f32 %v179, %v243
  %v308 = vadd.f32 %v180, %v244
  %v309 = vadd.f32 %v181, %v245
  %v310 = vadd.f32 %v182, %v246
  %v311 = vadd.f32 %v183, %v247
  %v312 = vadd.f32 %v184, %v248
  %v313 = vadd.f32 %v185, %v249
  %v314 = vadd.f32 %v186, %v250
  %v315 = vadd.f32 %v187, %v251
  %v316 = vadd.f32 %v188, %v252
  %v317 = vadd.f32 %v189, %v253
  %v318 = vadd.f32 %v190, %v254
  %v319 = vadd.f32 %v191, %v255
  %v320 = vadd.f32 %v192, %v256
  %v321 = vadd.f32 %v193, %v257
  %v322 = vadd.f32 %v194, %v258
  %v323 = vadd.f32 %v195, %v259
  %v324 = vadd.f32 %v196, %v260
  %v325 = vadd.f32 %v197, %v261
  %v326 = vadd.f32 %v198, %v262
  %v327 = vadd.f32 %v199, %v263
  %v328 = vadd.f32 %v200, %v264
  %v329 = vadd.f32 %v201, %v265
  %v330 = vadd.f32 %v202, %v266
  %v331 = vadd.f32 %v203, %v267
  %v332 = vadd.f32 %v204, %v268
  %v333 = vadd.f32 %v205, %v269
  %v334 = vadd.f32 %v206, %v270
  %v335 = vadd.f32 %v207, %v271
  %v336 = vadd.f32 %v208, %v272
  %v337 = vadd.f32 %v209, %v273
  %v338 = vadd.f32 %v210, %v274
  %v339 = vadd.f32 %v211, %v275
  %v340 = vadd.f32 %v212, %v276
  %v341 = vadd.f32 %v213, %v277
  %v342 = vadd.f32 %v214, %v278
  %v343 = vadd.f32 %v215, %v279
  %v344 = vadd.f32 %v216, %v280
  %v345 = vadd.f32 %v217, %v281
  %v346 = vadd.f32 %v218, %v282
  %v347 = vadd.f32 %v219, %v283
  %v348 = vadd.f32 %v220, %v284
  %v349 = vadd.f32 %v221, %v285
  %v350 = vadd.f32 %v222, %v286
  %v351 = vmax.f32 %v287, 0.0
  %v352 = vmax.f32 %v288, 0.0
  %v353 = vmax.f32 %v289, 0.0
  %v354 = vmax.f32 %v290, 0.0
  %v355 = vmax.f32 %v291, 0.0
  %v356 = vmax.f32 %v292, 0.0
  %v357 = vmax.f32 %v293, 0.0
  %v358 = vmax.f32 %v294, 0.0
  %v359 = vmax.f32 %v295, 0.0
  %v360 = vmax.f32 %v296, 0.0
  %v361 = vmax.f32 %v297, 0.0
  %v362 = vmax.f32 %v298, 0.0
  %v363 = vmax.f32 %v299, 0.0
  %v364 = vmax.f32 %v300, 0.0
  %v365 = vmax.f32 %v301, 0.0
  %v366 = vmax.f32 %v302, 0.0
  %v367 = vmax.f32 %v303, 0.0
  %v368 = vmax.f32 %v304, 0.0
  %v369 = vmax.f32 %v305, 0.0
  %v370 = vmax.f32 %v306, 0.0
  %v371 = vmax.f32 %v307, 0.0
  %v372 = vmax.f32 %v308, 0.0
  %v373 = vmax.f32 %v309, 0.0
  %v374 = vmax.f32 %v310, 0.0
  %v375 = vmax.f32 %v311, 0.0
  %v376 = vmax.f32 %v312, 0.0
  %v377 = vmax.f32 %v313, 0.0
  %v378 = vmax.f32 %v314, 0.0
  %v379 = vmax.f32 %v315, 0.0
  %v380 = vmax.f32 %v316, 0.0
  %v381 = vmax.f32 %v317, 0.0
  %v382 = vmax.f32 %v318, 0.0
  %v383 = vmax.f32 %v319, 0.0
  %v384 = vmax.f32 %v320, 0.0
  %v385 = vmax.f32 %v321, 0.0
  %v386 = vmax.f32 %v322, 0.0
  %v387 = vmax.f32 %v323, 0.0
  %v388 = vmax.f32 %v324, 0.0
  %v389 = vmax.f32 %v325, 0.0
  %v390 = vmax.f32 %v326, 0.0
  %v391 = vmax.f32 %v327, 0.0
  %v392 = vmax.f32 %v328, 0.0
  %v393 = vmax.f32 %v329, 0.0
  %v394 = vmax.f32 %v330, 0.0
  %v395 = vmax.f32 %v331, 0.0
  %v396 = vmax.f32 %v332, 0.0
  %v397 = vmax.f32 %v333, 0.0
  %v398 = vmax.f32 %v334, 0.0
  %v399 = vmax.f32 %v335, 0.0
  %v400 = vmax.f32 %v336, 0.0
  %v401 = vmax.f32 %v337, 0.0
  %v402 = vmax.f32 %v338, 0.0
  %v403 = vmax.f32 %v339, 0.0
  %v404 = vmax.f32 %v340, 0.0
  %v405 = vmax.f32 %v341, 0.0
  %v406 = vmax.f32 %v342, 0.0
  %v407 = vmax.f32 %v343, 0.0
  %v408 = vmax.f32 %v344, 0.0
  %v409 = vmax.f32 %v345, 0.0
  %v410 = vmax.f32 %v346, 0.0
  %v411 = vmax.f32 %v347, 0.0
  %v412 = vmax.f32 %v348, 0.0
  %v413 = vmax.f32 %v349, 0.0
  %v414 = vmax.f32 %v350, 0.0
  %vm415 = vcmask 31744
  %416 = vst.msk [vmem:[%s4] sm:$0xff] %vm415, %v351
  %417 = vst.msk [vmem:[%s4 + $0x8] sm:$0xff] %vm415, %v352
  %418 = vst.msk [vmem:[%s4 + $0x10] sm:$0xff] %vm415, %v353
  %419 = vst.msk [vmem:[%s4 + $0x18] sm:$0xff] %vm415, %v354
  %420 = vst.msk [vmem:[%s4 + $0x20] sm:$0xff] %vm415, %v355
  %421 = vst.msk [vmem:[%s4 + $0x28] sm:$0xff] %vm415, %v356
  %422 = vst.msk [vmem:[%s4 + $0x30] sm:$0xff] %vm415, %v357
  %423 = vst.msk [vmem:[%s4 + $0x38] sm:$0xff] %vm415, %v358
  %424 = vst.msk [vmem:[%s4 + $0x40] sm:$0xff] %vm415, %v359
  %425 = vst.msk [vmem:[%s4 + $0x48] sm:$0xff] %vm415, %v360
  %426 = vst.msk [vmem:[%s4 + $0x50] sm:$0xff] %vm415, %v361
  %427 = vst.msk [vmem:[%s4 + $0x58] sm:$0xff] %vm415, %v362
  %428 = vst.msk [vmem:[%s4 + $0x60] sm:$0xff] %vm415, %v363
  %429 = vst.msk [vmem:[%s4 + $0x68] sm:$0xff] %vm415, %v364
  %430 = vst.msk [vmem:[%s4 + $0x70] sm:$0xff] %vm415, %v365
  %431 = vst.msk [vmem:[%s4 + $0x78] sm:$0xff] %vm415, %v366
  %432 = vst.msk [vmem:[%s4 + $0x80] sm:$0xff] %vm415, %v367
  %433 = vst.msk [vmem:[%s4 + $0x88] sm:$0xff] %vm415, %v368
  %434 = vst.msk [vmem:[%s4 + $0x90] sm:$0xff] %vm415, %v369
  %435 = vst.msk [vmem:[%s4 + $0x98] sm:$0xff] %vm415, %v370
  %436 = vst.msk [vmem:[%s4 + $0xa0] sm:$0xff] %vm415, %v371
  %437 = vst.msk [vmem:[%s4 + $0xa8] sm:$0xff] %vm415, %v372
  %438 = vst.msk [vmem:[%s4 + $0xb0] sm:$0xff] %vm415, %v373
  %439 = vst.msk [vmem:[%s4 + $0xb8] sm:$0xff] %vm415, %v374
  %440 = vst.msk [vmem:[%s4 + $0xc0] sm:$0xff] %vm415, %v375
  %441 = vst.msk [vmem:[%s4 + $0xc8] sm:$0xff] %vm415, %v376
  %442 = vst.msk [vmem:[%s4 + $0xd0] sm:$0xff] %vm415, %v377
  %443 = vst.msk [vmem:[%s4 + $0xd8] sm:$0xff] %vm415, %v378
  %444 = vst.msk [vmem:[%s4 + $0xe0] sm:$0xff] %vm415, %v379
  %445 = vst.msk [vmem:[%s4 + $0xe8] sm:$0xff] %vm415, %v380
  %446 = vst.msk [vmem:[%s4 + $0xf0] sm:$0xff] %vm415, %v381
  %447 = vst.msk [vmem:[%s4 + $0xf8] sm:$0xff] %vm415, %v382
  %448 = vst.msk [vmem:[%s4 + $0x100] sm:$0xff] %vm415, %v383
  %449 = vst.msk [vmem:[%s4 + $0x108] sm:$0xff] %vm415, %v384
  %450 = vst.msk [vmem:[%s4 + $0x110] sm:$0xff] %vm415, %v385
  %451 = vst.msk [vmem:[%s4 + $0x118] sm:$0xff] %vm415, %v386
  %452 = vst.msk [vmem:[%s4 + $0x120] sm:$0xff] %vm415, %v387
  %453 = vst.msk [vmem:[%s4 + $0x128] sm:$0xff] %vm415, %v388
  %454 = vst.msk [vmem:[%s4 + $0x130] sm:$0xff] %vm415, %v389
  %455 = vst.msk [vmem:[%s4 + $0x138] sm:$0xff] %vm415, %v390
  %456 = vst.msk [vmem:[%s4 + $0x140] sm:$0xff] %vm415, %v391
  %457 = vst.msk [vmem:[%s4 + $0x148] sm:$0xff] %vm415, %v392
  %458 = vst.msk [vmem:[%s4 + $0x150] sm:$0xff] %vm415, %v393
  %459 = vst.msk [vmem:[%s4 + $0x158] sm:$0xff] %vm415, %v394
  %460 = vst.msk [vmem:[%s4 + $0x160] sm:$0xff] %vm415, %v395
  %461 = vst.msk [vmem:[%s4 + $0x168] sm:$0xff] %vm415, %v396
  %462 = vst.msk [vmem:[%s4 + $0x170] sm:$0xff] %vm415, %v397
  %463 = vst.msk [vmem:[%s4 + $0x178] sm:$0xff] %vm415, %v398
  %464 = vst.msk [vmem:[%s4 + $0x180] sm:$0xff] %vm415, %v399
  %465 = vst.msk [vmem:[%s4 + $0x188] sm:$0xff] %vm415, %v400
  %466 = vst.msk [vmem:[%s4 + $0x190] sm:$0xff] %vm415, %v401
  %467 = vst.msk [vmem:[%s4 + $0x198] sm:$0xff] %vm415, %v402
  %468 = vst.msk [vmem:[%s4 + $0x1a0] sm:$0xff] %vm415, %v403
  %469 = vst.msk [vmem:[%s4 + $0x1a8] sm:$0xff] %vm415, %v404
  %470 = vst.msk [vmem:[%s4 + $0x1b0] sm:$0xff] %vm415, %v405
  %471 = vst.msk [vmem:[%s4 + $0x1b8] sm:$0xff] %vm415, %v406
  %472 = vst.msk [vmem:[%s4 + $0x1c0] sm:$0xff] %vm415, %v407
  %473 = vst.msk [vmem:[%s4 + $0x1c8] sm:$0xff] %vm415, %v408
  %474 = vst.msk [vmem:[%s4 + $0x1d0] sm:$0xff] %vm415, %v409
  %475 = vst.msk [vmem:[%s4 + $0x1d8] sm:$0xff] %vm415, %v410
  %476 = vst.msk [vmem:[%s4 + $0x1e0] sm:$0xff] %vm415, %v411
  %477 = vst.msk [vmem:[%s4 + $0x1e8] sm:$0xff] %vm415, %v412
  %478 = vst.msk [vmem:[%s4 + $0x1f0] sm:$0xff] %vm415, %v413
  %479 = vst.msk [vmem:[%s4 + $0x1f8] sm:$0xff] %vm415, %v414
  // Predicated region
  $region18: #{res_block_standard.7} parent=0 // pred_check
    _
  $region19: #{res_block_standard.7} parent=0 // pred_check_branch
    %481 = sbr.rel (0) target = $region21
  $region20: #{res_block_standard.7} parent=0 // pred_region
    _
  $region21: #{res_block_standard.7} parent=0 // pred_fallthru
    _
  // Predicated region
  $region22: #{res_block_standard.7} parent=0 // pred_check
    _
  $region23: #{res_block_standard.7} parent=0 // pred_check_branch
    %483 = sbr.rel (0) target = $region25
  $region24: #{res_block_standard.7} parent=0 // pred_region
    _
  $region25: #{res_block_standard.7} parent=0 // pred_fallthru
    _

</llo_original>
